<compile_context>
chip_gen: v7x
topology: tpu7x:2x2x1
jax: 0.10.0
libtpu: 0.0.40
codegen_flags: <defaults>
</compile_context>

<pallas_src>
import functools

import jax
import jax.numpy as jnp
from jax.experimental import pallas as pl
from jax.experimental.pallas import tpu as pltpu


def _round_up(x, m):
    return (x + m - 1) // m * m


def _choose_tiles(n):
    """Row tile tm and contraction tile tk.

    tk is rectangular / larger than tm to amortize per-grid-step overhead;
    the extra zero padding it forces is bounded to ~12.5% of the rows.
    """
    n128 = _round_up(n, 128)
    tm = 256 if n128 % 256 == 0 else 128
    if n128 <= 1024:
        return tm, n128                       # whole contraction in one tile
    for cand in (2048, 1024, 512):
        if _round_up(n128, cand) <= n128 + n128 // 8:
            return tm, cand
    return tm, 256


# ----------------------------- Pallas kernel --------------------------------
def fused_gcn_kernel(a_ref, x_ref, w1_ref, b1_ref, w2_ref, b2_ref,
                     o_ref, xw_ref, h1_ref, *rest, tm, tk, a_resident):
    """Fused 2-layer GCN.  Grid = (layer l, row tile i, contraction tile k).

    Scratch:
      xw_ref : [n_pad, d_pad] bf16 -- X@W1 (l=0) or h1@W2 (l=1), built slice by
                                      slice during the i==0 sweep of each layer.
      h1_ref : [n_pad, d_pad] bf16 -- relu(A_hat @ XW1 + b1), resident in VMEM.
      rest   : (a_vmem,) when a_resident -- full A_hat captured in VMEM during
               layer 0 so layer 1 does not re-stream it from HBM.

    The f32 output block doubles as the accumulator: its block index is pinned
    during layer 0 (never flushed there, index constant) and pinned per row
    tile across k in layer 1.  This relies on the strictly sequential
    ("arbitrary") grid configured by the caller.
    """
    l = pl.program_id(0)
    i = pl.program_id(1)
    k = pl.program_id(2)
    nk = pl.num_programs(2)

    i_off = pl.multiple_of(i * tm, tm)
    k_off = pl.multiple_of(k * tk, tk)

    # --- Phase A (folded into the k loop): k-th row slice of XW --------------
    @pl.when(jnp.logical_and(i == 0, l == 0))
    def _():
        xw = jnp.dot(x_ref[...], w1_ref[...], preferred_element_type=jnp.float32)
        xw_ref[pl.ds(k_off, tk), :] = xw.astype(xw_ref.dtype)

    @pl.when(jnp.logical_and(i == 0, l == 1))
    def _():
        hw = jnp.dot(h1_ref[pl.ds(k_off, tk), :], w2_ref[...],
                     preferred_element_type=jnp.float32)
        xw_ref[pl.ds(k_off, tk), :] = hw.astype(xw_ref.dtype)

    # --- Phase B: accumulate A_hat[i, k] @ XW[k] into the f32 output block ---
    @pl.when(k == 0)
    def _():
        o_ref[...] = jnp.zeros_like(o_ref)

    if a_resident:
        a_vmem = rest[0]

        @pl.when(l == 0)
        def _():
            # Capture the streamed tile so layer 1 reads A_hat from VMEM only.
            a_vmem[pl.ds(i_off, tm), pl.ds(k_off, tk)] = a_ref[...]

        a_tile = a_vmem[pl.ds(i_off, tm), pl.ds(k_off, tk)]
    else:
        a_tile = a_ref[...]

    o_ref[...] += jnp.dot(a_tile, xw_ref[pl.ds(k_off, tk), :],
                          preferred_element_type=jnp.float32)

    # --- Phase C: finalize (bias + activation) at the last contraction step --
    last_k = k == nk - 1

    @pl.when(jnp.logical_and(last_k, l == 0))
    def _():
        h = jnp.maximum(o_ref[...] + b1_ref[...], 0.0)
        h1_ref[pl.ds(i_off, tm), :] = h.astype(h1_ref.dtype)
        # eval-mode dropout == identity

    @pl.when(jnp.logical_and(last_k, l == 1))
    def _():
        o_ref[...] += b2_ref[...]


# ------------------------------ JAX glue -------------------------------------
def normalized_adjacency(edge_index, num_nodes):
    """Dense GCN normalization D^-1/2 (A + I) D^-1/2 (PyG gcn_norm conventions:
    messages flow src->dst, duplicate edges scatter-ADD)."""
    src, dst = edge_index[0], edge_index[1]
    adj = jnp.zeros((num_nodes, num_nodes), jnp.float32)
    adj = adj.at[dst, src].add(1.0)
    adj = adj + jnp.eye(num_nodes, dtype=jnp.float32)
    deg = jnp.sum(adj, axis=1)
    dinv = jnp.where(deg > 0, 1.0 / jnp.sqrt(deg), 0.0)
    return dinv[:, None] * adj * dinv[None, :]


def glorot(key, shape):
    fan_in, fan_out = shape
    limit = jnp.sqrt(6.0 / (fan_in + fan_out))
    return jax.random.uniform(key, shape, jnp.float32, -limit, limit)


def prepare_graph(x, edge_index):
    """One-time, graph-dependent preprocessing.  Keep this OUT of the
    per-inference path and cache the result for a fixed graph: the dense
    scatter-add, padding and bf16 casts touch N^2 several times in HBM."""
    n, f = x.shape
    tm, tk = _choose_tiles(n)
    n_pad = _round_up(n, tk)              # tk is a multiple of tm
    f_pad = _round_up(f, 128)
    a_hat = normalized_adjacency(edge_index, n)
    a_p = jnp.pad(a_hat, ((0, n_pad - n), (0, n_pad - n))).astype(jnp.bfloat16)
    x_p = jnp.pad(x, ((0, n_pad - n), (0, f_pad - f))).astype(jnp.bfloat16)
    return {"a": a_p, "x": x_p, "n": n, "tm": tm, "tk": tk}


@functools.partial(jax.jit, static_argnames=("n", "tm", "tk"))
def gcn_forward_prepared(a_p, x_p, params, *, n, tm, tk):
    n_pad = a_p.shape[0]
    f_pad = x_p.shape[1]
    f = params["w1"].shape[0]
    hidden = params["w1"].shape[1]
    classes = params["w2"].shape[1]
    d_pad = _round_up(max(hidden, classes), 128)   # lane-dense hidden & output

    w1_p = jnp.pad(params["w1"], ((0, f_pad - f), (0, d_pad - hidden))).astype(jnp.bfloat16)
    w2_p = jnp.pad(params["w2"], ((0, d_pad - hidden), (0, d_pad - classes))).astype(jnp.bfloat16)
    b1_p = jnp.pad(params["b1"], (0, d_pad - hidden)).reshape(1, d_pad).astype(jnp.float32)
    b2_p = jnp.pad(params["b2"], (0, d_pad - classes)).reshape(1, d_pad).astype(jnp.float32)

    ni = n_pad // tm
    nk = n_pad // tk
    grid = (2, ni, nk)                    # (layer, row tile, contraction tile)

    # Keep A_hat resident in VMEM (captured while layer 0 streams it) when it
    # fits a conservative budget -> A is read from HBM once instead of twice.
    a_resident = (n_pad * n_pad * 2) <= (24 << 20)

    # Explicit scoped-VMEM limit derived from the actual footprint.  Constant
    # index (weight/bias) blocks are small after X is streamed, so their
    # default double-buffering is accounted for here rather than removed.
    footprint = (
        2 * tm * tk * 2                      # A tile (double buffered)
        + 2 * tk * f_pad * 2                 # X row block (double buffered)
        + 2 * (f_pad + d_pad) * d_pad * 2    # W1 + W2 (constant index, 2 bufs)
        + 2 * 2 * 8 * d_pad * 4              # b1 + b2 (sublane padded, 2 bufs)
        + 2 * tm * d_pad * 4                 # output block (double buffered)
        + 2 * n_pad * d_pad * 2              # xw + h1 scratch
        + (n_pad * n_pad * 2 if a_resident else 0)
    )
    vmem_limit = min(max(int(1.5 * footprint) + (4 << 20), 32 << 20), 64 << 20)

    def x_index(l, i, k):
        # Stream X row-block k only while the XW1 slices are being built
        # (l==0, i==0); otherwise pin to block 0 so no redundant DMA is issued.
        return (jnp.where(jnp.logical_and(l == 0, i == 0), k, 0), 0)

    def a_index(l, i, k):
        if a_resident:
            # Stream A only during layer 0 (captured into VMEM there); pin to
            # (0, 0) during layer 1 so it is not re-fetched from HBM.
            return (i * (1 - l), k * (1 - l))
        return (i, k)

    in_specs = [
        pl.BlockSpec((tm, tk), a_index),                        # A_hat tile
        pl.BlockSpec((tk, f_pad), x_index),                     # X row block
        pl.BlockSpec((f_pad, d_pad), lambda l, i, k: (0, 0)),   # W1 (resident)
        pl.BlockSpec((1, d_pad), lambda l, i, k: (0, 0)),       # b1 (resident)
        pl.BlockSpec((d_pad, d_pad), lambda l, i, k: (0, 0)),   # W2 (resident)
        pl.BlockSpec((1, d_pad), lambda l, i, k: (0, 0)),       # b2 (resident)
    ]
    # Output block index: pinned to (0, 0) for the whole of layer 0 (it is the
    # f32 accumulator and is never flushed there, since the index is constant)
    # and pinned to (i, 0) across k in layer 1 (accumulate, then +b2).  This
    # relies on the strictly sequential ("arbitrary") grid below.
    out_spec = pl.BlockSpec((tm, d_pad), lambda l, i, k: (l * i, 0))

    scratch = [
        pltpu.VMEM((n_pad, d_pad), jnp.bfloat16),   # XW (per-layer product)
        pltpu.VMEM((n_pad, d_pad), jnp.bfloat16),   # h1 (layer-1 input)
    ]
    if a_resident:
        scratch.append(pltpu.VMEM((n_pad, n_pad), jnp.bfloat16))   # A_hat copy

    out_p = pl.pallas_call(
        functools.partial(fused_gcn_kernel, tm=tm, tk=tk, a_resident=a_resident),
        out_shape=jax.ShapeDtypeStruct((n_pad, d_pad), jnp.float32),
        grid_spec=pltpu.PrefetchScalarGridSpec(
            num_scalar_prefetch=0,
            grid=grid,
            in_specs=in_specs,
            out_specs=out_spec,
            scratch_shapes=scratch,
        ),
        compiler_params=pltpu.CompilerParams(
            # Layer 1 depends on ALL of layer 0 through h1/xw/A scratch, so
            # every grid axis must execute sequentially in the fused form.
            dimension_semantics=("arbitrary", "arbitrary", "arbitrary"),
            vmem_limit_bytes=vmem_limit,
        ),
    )(a_p, x_p, w1_p, b1_p, w2_p, b2_p)

    return out_p[:n, :classes]


def gcn_forward(x, edge_index, params):
    """Convenience wrapper: prepare (once) + run.  For repeated inference on a
    fixed graph, call prepare_graph() once and reuse its result."""
    g = prepare_graph(x, edge_index)
    return gcn_forward_prepared(g["a"], g["x"], params,
                                n=g["n"], tm=g["tm"], tk=g["tk"])


# ------------------------------- driver --------------------------------------
if __name__ == "__main__":
    # Small synthetic "Cora-like" problem (deterministic).
    num_nodes = 100
    num_features = 48
    hidden_channels = 32
    num_classes = 8
    num_edges = 400

    key = jax.random.PRNGKey(0)
    kx, ke1, ke2, kw1, kw2, kb1, kb2 = jax.random.split(key, 7)

    x = jax.random.normal(kx, (num_nodes, num_features), jnp.float32)
    src = jax.random.randint(ke1, (num_edges,), 0, num_nodes)
    dst = jax.random.randint(ke2, (num_edges,), 0, num_nodes)
    edge_index = jnp.stack([src, dst], axis=0).astype(jnp.int32)

    params = {
        "w1": glorot(kw1, (num_features, hidden_channels)),
        "b1": 0.1 * jax.random.normal(kb1, (hidden_channels,), jnp.float32),
        "w2": glorot(kw2, (hidden_channels, num_classes)),
        "b2": 0.1 * jax.random.normal(kb2, (num_classes,), jnp.float32),
    }

    # Graph-dependent prep (adjacency, padding, casts) runs ONCE, outside the
    # jitted per-inference path.
    graph = prepare_graph(x, edge_index)
    out = gcn_forward_prepared(graph["a"], graph["x"], params,
                               n=graph["n"], tm=graph["tm"], tk=graph["tk"])
    jax.block_until_ready(out)
    assert out.shape == (num_nodes, num_classes)

    # Plain-JAX f32 reference (kernel uses bf16 MXU inputs -> loose tolerance).
    a_hat = normalized_adjacency(edge_index, num_nodes)
    h1 = jnp.maximum(a_hat @ (x @ params["w1"]) + params["b1"], 0.0)
    ref = a_hat @ (h1 @ params["w2"]) + params["b2"]
    max_err = float(jnp.max(jnp.abs(out - ref)))
    assert jnp.allclose(out, ref, rtol=5e-2, atol=5e-2), f"max abs err {max_err}"

    print("KERNEL_OK")
</pallas_src>

<mosaic_0001>
module attributes {stable_mosaic.version = 11 : i64} {
  func.func @fused_gcn_kernel(%arg0: i32, %arg1: i32, %arg2: i32, %arg3: memref<128x128xbf16, #tpu.memory_space<vmem>>, %arg4: memref<128x128xbf16, #tpu.memory_space<vmem>>, %arg5: memref<128x128xbf16, #tpu.memory_space<vmem>>, %arg6: memref<1x128xf32, #tpu.memory_space<vmem>>, %arg7: memref<128x128xbf16, #tpu.memory_space<vmem>>, %arg8: memref<1x128xf32, #tpu.memory_space<vmem>>, %arg9: memref<128x128xf32, #tpu.memory_space<vmem>>, %arg10: memref<128x128xbf16, #tpu.memory_space<vmem>>, %arg11: memref<128x128xbf16, #tpu.memory_space<vmem>>, %arg12: memref<128x128xbf16, #tpu.memory_space<vmem>>) attributes {dimension_semantics = [#tpu.dimension_semantics<arbitrary>, #tpu.dimension_semantics<arbitrary>, #tpu.dimension_semantics<arbitrary>], iteration_bounds = array<i64: 2, 1, 1>, scalar_prefetch = 0 : i64, scratch_operands = 3 : i64, tpu.core_type = #tpu.core_type<tc>, window_params = [{transform_indices = @transform_0, window_bounds = array<i64: 128, 128>}, {transform_indices = @transform_1, window_bounds = array<i64: 128, 128>}, {pipeline_mode = #tpu.pipeline_mode<synchronous>, transform_indices = @transform_2, window_bounds = array<i64: 128, 128>}, {pipeline_mode = #tpu.pipeline_mode<synchronous>, transform_indices = @transform_3, window_bounds = array<i64: 1, 128>}, {pipeline_mode = #tpu.pipeline_mode<synchronous>, transform_indices = @transform_4, window_bounds = array<i64: 128, 128>}, {pipeline_mode = #tpu.pipeline_mode<synchronous>, transform_indices = @transform_5, window_bounds = array<i64: 1, 128>}, {transform_indices = @transform_6, window_bounds = array<i64: 128, 128>}]} {
    %c128_i32 = arith.constant 128 : i32
    %0 = arith.muli %arg1, %c128_i32 : i32
    %1 = tpu.assume_multiple %0, 128 : i32
    %c128_i32_0 = arith.constant 128 : i32
    %2 = arith.muli %arg2, %c128_i32_0 : i32
    %3 = tpu.assume_multiple %2, 128 : i32
    %c0_i32 = arith.constant 0 : i32
    %4 = arith.cmpi eq, %arg1, %c0_i32 : i32
    %c0_i32_1 = arith.constant 0 : i32
    %5 = arith.cmpi eq, %arg0, %c0_i32_1 : i32
    %6 = arith.andi %4, %5 : i1
    %7 = arith.extui %6 : i1 to i32
    %c0_i32_2 = arith.constant 0 : i32
    %8 = arith.cmpi ne, %7, %c0_i32_2 : i32
    scf.if %8 {
      %c0_18 = arith.constant 0 : index
      %c0_19 = arith.constant 0 : index
      %38 = vector.load %arg4[%c0_18, %c0_19] : memref<128x128xbf16, #tpu.memory_space<vmem>>, vector<128x128xbf16>
      %c0_20 = arith.constant 0 : index
      %c0_21 = arith.constant 0 : index
      %39 = vector.load %arg5[%c0_20, %c0_21] : memref<128x128xbf16, #tpu.memory_space<vmem>>, vector<128x128xbf16>
      %cst_22 = arith.constant dense<0.000000e+00> : vector<128x128xf32>
      %40 = tpu.matmul %38, %39, %cst_22 {dimension_numbers = #tpu.dot_dimension_numbers<[1], [0], [0], [1], [0, 0, 1, 1], [], []>} : vector<128x128xbf16>, vector<128x128xbf16>, vector<128x128xf32> -> vector<128x128xf32>
      %41 = arith.truncf %40 : vector<128x128xf32> to vector<128x128xbf16>
      %42 = arith.index_cast %3 : i32 to index
      %c0_23 = arith.constant 0 : index
      %43 = vector.load %arg10[%42, %c0_23] : memref<128x128xbf16, #tpu.memory_space<vmem>>, vector<128x128xbf16>
      tpu.vector_store %arg10[%42, %c0_23], %41 {strides = array<i32>} : memref<128x128xbf16, #tpu.memory_space<vmem>>, vector<128x128xbf16>,
    } else {
    }
    %c0_i32_3 = arith.constant 0 : i32
    %9 = arith.cmpi eq, %arg1, %c0_i32_3 : i32
    %c1_i32 = arith.constant 1 : i32
    %10 = arith.cmpi eq, %arg0, %c1_i32 : i32
    %11 = arith.andi %9, %10 : i1
    %12 = arith.extui %11 : i1 to i32
    %c0_i32_4 = arith.constant 0 : i32
    %13 = arith.cmpi ne, %12, %c0_i32_4 : i32
    scf.if %13 {
      %38 = arith.index_cast %3 : i32 to index
      %c0_18 = arith.constant 0 : index
      %39 = vector.load %arg11[%38, %c0_18] : memref<128x128xbf16, #tpu.memory_space<vmem>>, vector<128x128xbf16>
      %c0_19 = arith.constant 0 : index
      %c0_20 = arith.constant 0 : index
      %40 = vector.load %arg7[%c0_19, %c0_20] : memref<128x128xbf16, #tpu.memory_space<vmem>>, vector<128x128xbf16>
      %cst_21 = arith.constant dense<0.000000e+00> : vector<128x128xf32>
      %41 = tpu.matmul %39, %40, %cst_21 {dimension_numbers = #tpu.dot_dimension_numbers<[1], [0], [0], [1], [0, 0, 1, 1], [], []>} : vector<128x128xbf16>, vector<128x128xbf16>, vector<128x128xf32> -> vector<128x128xf32>
      %42 = arith.truncf %41 : vector<128x128xf32> to vector<128x128xbf16>
      %43 = arith.index_cast %3 : i32 to index
      %c0_22 = arith.constant 0 : index
      %44 = vector.load %arg10[%43, %c0_22] : memref<128x128xbf16, #tpu.memory_space<vmem>>, vector<128x128xbf16>
      tpu.vector_store %arg10[%43, %c0_22], %42 {strides = array<i32>} : memref<128x128xbf16, #tpu.memory_space<vmem>>, vector<128x128xbf16>,
    } else {
    }
    %c0_i32_5 = arith.constant 0 : i32
    %14 = arith.cmpi eq, %arg2, %c0_i32_5 : i32
    %15 = arith.extui %14 : i1 to i32
    %c0_i32_6 = arith.constant 0 : i32
    %16 = arith.cmpi ne, %15, %c0_i32_6 : i32
    scf.if %16 {
      %cst_18 = arith.constant 0.000000e+00 : f32
      %38 = vector.broadcast %cst_18 : f32 to vector<128x128xf32>
      %c0_19 = arith.constant 0 : index
      %c0_20 = arith.constant 0 : index
      %39 = vector.load %arg9[%c0_19, %c0_20] : memref<128x128xf32, #tpu.memory_space<vmem>>, vector<128x128xf32>
      tpu.vector_store %arg9[%c0_19, %c0_20], %38 {strides = array<i32>} : memref<128x128xf32, #tpu.memory_space<vmem>>, vector<128x128xf32>,
    } else {
    }
    %c0_i32_7 = arith.constant 0 : i32
    %17 = arith.cmpi eq, %arg0, %c0_i32_7 : i32
    %18 = arith.extui %17 : i1 to i32
    %c0_i32_8 = arith.constant 0 : i32
    %19 = arith.cmpi ne, %18, %c0_i32_8 : i32
    scf.if %19 {
      %c0_18 = arith.constant 0 : index
      %c0_19 = arith.constant 0 : index
      %38 = vector.load %arg3[%c0_18, %c0_19] : memref<128x128xbf16, #tpu.memory_space<vmem>>, vector<128x128xbf16>
      %39 = arith.index_cast %1 : i32 to index
      %40 = arith.index_cast %3 : i32 to index
      %41 = vector.load %arg12[%39, %40] : memref<128x128xbf16, #tpu.memory_space<vmem>>, vector<128x128xbf16>
      tpu.vector_store %arg12[%39, %40], %38 {strides = array<i32>} : memref<128x128xbf16, #tpu.memory_space<vmem>>, vector<128x128xbf16>,
    } else {
    }
    %20 = arith.index_cast %1 : i32 to index
    %21 = arith.index_cast %3 : i32 to index
    %22 = vector.load %arg12[%20, %21] : memref<128x128xbf16, #tpu.memory_space<vmem>>, vector<128x128xbf16>
    %c0 = arith.constant 0 : index
    %c0_9 = arith.constant 0 : index
    %23 = vector.load %arg9[%c0, %c0_9] : memref<128x128xf32, #tpu.memory_space<vmem>>, vector<128x128xf32>
    %24 = arith.index_cast %3 : i32 to index
    %c0_10 = arith.constant 0 : index
    %25 = vector.load %arg10[%24, %c0_10] : memref<128x128xbf16, #tpu.memory_space<vmem>>, vector<128x128xbf16>
    %cst = arith.constant dense<0.000000e+00> : vector<128x128xf32>
    %26 = tpu.matmul %22, %25, %cst {dimension_numbers = #tpu.dot_dimension_numbers<[1], [0], [0], [1], [0, 0, 1, 1], [], []>} : vector<128x128xbf16>, vector<128x128xbf16>, vector<128x128xf32> -> vector<128x128xf32>
    %27 = arith.addf %23, %26 : vector<128x128xf32>
    %c0_11 = arith.constant 0 : index
    %c0_12 = arith.constant 0 : index
    %28 = vector.load %arg9[%c0_11, %c0_12] : memref<128x128xf32, #tpu.memory_space<vmem>>, vector<128x128xf32>
    tpu.vector_store %arg9[%c0_11, %c0_12], %27 {strides = array<i32>} : memref<128x128xf32, #tpu.memory_space<vmem>>, vector<128x128xf32>,
    %c0_i32_13 = arith.constant 0 : i32
    %29 = arith.cmpi eq, %arg2, %c0_i32_13 : i32
    %c0_i32_14 = arith.constant 0 : i32
    %30 = arith.cmpi eq, %arg0, %c0_i32_14 : i32
    %31 = arith.andi %29, %30 : i1
    %32 = arith.extui %31 : i1 to i32
    %c0_i32_15 = arith.constant 0 : i32
    %33 = arith.cmpi ne, %32, %c0_i32_15 : i32
    scf.if %33 {
      %c0_18 = arith.constant 0 : index
      %c0_19 = arith.constant 0 : index
      %38 = vector.load %arg9[%c0_18, %c0_19] : memref<128x128xf32, #tpu.memory_space<vmem>>, vector<128x128xf32>
      %c0_20 = arith.constant 0 : index
      %c0_21 = arith.constant 0 : index
      %39 = vector.load %arg6[%c0_20, %c0_21] : memref<1x128xf32, #tpu.memory_space<vmem>>, vector<1x128xf32>
      %40 = vector.broadcast %39 : vector<1x128xf32> to vector<128x128xf32>
      %41 = arith.addf %38, %40 : vector<128x128xf32>
      %cst_22 = arith.constant 0.000000e+00 : f32
      %42 = vector.broadcast %cst_22 : f32 to vector<128x128xf32>
      %43 = arith.maximumf %41, %42 : vector<128x128xf32>
      %44 = arith.truncf %43 : vector<128x128xf32> to vector<128x128xbf16>
      %45 = arith.index_cast %1 : i32 to index
      %c0_23 = arith.constant 0 : index
      %46 = vector.load %arg11[%45, %c0_23] : memref<128x128xbf16, #tpu.memory_space<vmem>>, vector<128x128xbf16>
      tpu.vector_store %arg11[%45, %c0_23], %44 {strides = array<i32>} : memref<128x128xbf16, #tpu.memory_space<vmem>>, vector<128x128xbf16>,
    } else {
    }
    %c1_i32_16 = arith.constant 1 : i32
    %34 = arith.cmpi eq, %arg0, %c1_i32_16 : i32
    %35 = arith.andi %29, %34 : i1
    %36 = arith.extui %35 : i1 to i32
    %c0_i32_17 = arith.constant 0 : i32
    %37 = arith.cmpi ne, %36, %c0_i32_17 : i32
    scf.if %37 {
      %c0_18 = arith.constant 0 : index
      %c0_19 = arith.constant 0 : index
      %38 = vector.load %arg9[%c0_18, %c0_19] : memref<128x128xf32, #tpu.memory_space<vmem>>, vector<128x128xf32>
      %c0_20 = arith.constant 0 : index
      %c0_21 = arith.constant 0 : index
      %39 = vector.load %arg8[%c0_20, %c0_21] : memref<1x128xf32, #tpu.memory_space<vmem>>, vector<1x128xf32>
      %40 = vector.broadcast %39 : vector<1x128xf32> to vector<128x128xf32>
      %41 = arith.addf %38, %40 : vector<128x128xf32>
      %c0_22 = arith.constant 0 : index
      %c0_23 = arith.constant 0 : index
      %42 = vector.load %arg9[%c0_22, %c0_23] : memref<128x128xf32, #tpu.memory_space<vmem>>, vector<128x128xf32>
      tpu.vector_store %arg9[%c0_22, %c0_23], %41 {strides = array<i32>} : memref<128x128xf32, #tpu.memory_space<vmem>>, vector<128x128xf32>,
    } else {
    }
    return
  }
  func.func @transform_0(%arg0: i32, %arg1: i32, %arg2: i32) -> (i32, i32) {
    %c1_i32 = arith.constant 1 : i32
    %0 = arith.subi %c1_i32, %arg0 : i32
    %1 = arith.muli %arg1, %0 : i32
    %c1_i32_0 = arith.constant 1 : i32
    %2 = arith.subi %c1_i32_0, %arg0 : i32
    %3 = arith.muli %arg2, %2 : i32
    %c0_i32 = arith.constant 0 : i32
    return %1, %3 : i32, i32
  }
  func.func @transform_1(%arg0: i32, %arg1: i32, %arg2: i32) -> (i32, i32) {
    %c0_i32 = arith.constant 0 : i32
    %0 = arith.cmpi eq, %arg0, %c0_i32 : i32
    %c0_i32_0 = arith.constant 0 : i32
    %1 = arith.cmpi eq, %arg1, %c0_i32_0 : i32
    %2 = arith.andi %0, %1 : i1
    %c0_i32_1 = arith.constant 0 : i32
    %3 = arith.select %2, %arg2, %c0_i32_1 : i32
    %c0_i32_2 = arith.constant 0 : i32
    %c0_i32_3 = arith.constant 0 : i32
    return %3, %c0_i32_2 : i32, i32
  }
  func.func @transform_2(%arg0: i32, %arg1: i32, %arg2: i32) -> (i32, i32) {
    %c0_i32 = arith.constant 0 : i32
    %c0_i32_0 = arith.constant 0 : i32
    %c0_i32_1 = arith.constant 0 : i32
    return %c0_i32, %c0_i32_0 : i32, i32
  }
  func.func @transform_3(%arg0: i32, %arg1: i32, %arg2: i32) -> (i32, i32) {
    %c0_i32 = arith.constant 0 : i32
    %c0_i32_0 = arith.constant 0 : i32
    %c0_i32_1 = arith.constant 0 : i32
    return %c0_i32, %c0_i32_0 : i32, i32
  }
  func.func @transform_4(%arg0: i32, %arg1: i32, %arg2: i32) -> (i32, i32) {
    %c0_i32 = arith.constant 0 : i32
    %c0_i32_0 = arith.constant 0 : i32
    %c0_i32_1 = arith.constant 0 : i32
    return %c0_i32, %c0_i32_0 : i32, i32
  }
  func.func @transform_5(%arg0: i32, %arg1: i32, %arg2: i32) -> (i32, i32) {
    %c0_i32 = arith.constant 0 : i32
    %c0_i32_0 = arith.constant 0 : i32
    %c0_i32_1 = arith.constant 0 : i32
    return %c0_i32, %c0_i32_0 : i32, i32
  }
  func.func @transform_6(%arg0: i32, %arg1: i32, %arg2: i32) -> (i32, i32) {
    %0 = arith.muli %arg0, %arg1 : i32
    %c0_i32 = arith.constant 0 : i32
    %c0_i32_0 = arith.constant 0 : i32
    return %0, %c0_i32 : i32, i32
  }
}

</mosaic_0001>

<llo_original>
// kernel: gcn_forward_prepared.1
$region0: #{gcn_forward_prepared.1}
  #allocation0 [shape = 'u32[]', space=smem, size = 0x4, offset = 0x4, fixed_abs, tag = 'smem constant byte address 0x4 - core index']
  #allocation1 [shape = 'u32[144,128]{1,0:T(1,128)}', space=vmem, size = 0x12000, scoped, tag = 'internal scratch']
  #allocation2 [shape = 'bf16[128,128]{1,0:T(16,128)(2,1)}', space=vmem, size = 0x8000, scoped, tag = 'scratch operand']
  #allocation3 [shape = 'bf16[128,128]{1,0:T(16,128)(2,1)}', space=vmem, size = 0x8000, scoped, tag = 'scratch operand']
  #allocation4 [shape = 'bf16[128,128]{1,0:T(16,128)(2,1)}', space=vmem, size = 0x8000, scoped, tag = 'scratch operand']
  %s0 = inlined_call_operand.vmem [shape: bf16[128,128], index: 0, kind: input, shape index: {}]
  %s1 = inlined_call_operand.vmem [shape: bf16[128,128], index: 1, kind: input, shape index: {}]
  %s2 = inlined_call_operand.vmem [shape: bf16[128,128], index: 2, kind: input, shape index: {}]
  %s3 = inlined_call_operand.vmem [shape: f32[1,128], index: 3, kind: input, shape index: {}]
  %s4 = inlined_call_operand.vmem [shape: bf16[128,128], index: 4, kind: input, shape index: {}]
  %s5 = inlined_call_operand.vmem [shape: f32[1,128], index: 5, kind: input, shape index: {}]
  %s6 = inlined_call_operand.vmem [shape: f32[128,128], index: 6, kind: output, shape index: {}]
  %s7 = sld [smem:[#allocation0]]
  $region81: #{gcn_forward_prepared.1} parent=0
    _
  %s9 = ssub.s32 1, %s7
  %s10 = scalar_select 0, %s9, %s7
  loop: start=0, step=1, limit=4
  $region2: #{gcn_forward_prepared.1} parent=0 // loop_pre_header
    _
  $region3: #{gcn_forward_prepared.1} parent=0 // loop_header
    %s12 = sphi 0, %s16
    %p13 = scmp.ge.s32.totalorder %s12, 4
    %s19 = sphi 0, %s38
    %s20 = sphi 0, %s34
    %s21 = sphi 0, %s30
    %s22 = sphi 0, %s19
    %s23 = sphi 0, %s20
    %s24 = sphi 0, %s21
    %s25 = sphi 0, %s22
    %s26 = sphi 0, %s23
    %s27 = sphi 0, %s24
    %s49 = sphi 0, %s51
    %s52 = sphi 0, %s49
    %s53 = sphi 0, %s52
    %s69 = sphi 0, %s53
    %s85 = sphi 0, %s87
    %s88 = sphi 0, %s85
    %s89 = sphi 0, %s88
    %s105 = sphi 0, %s89
    %s109 = sphi 0, %s109
    %s111 = sphi 0, %s109
    %s112 = sphi 0, %s111
    %s126 = sphi 0, %s112
    %s130 = sphi 0, %s130
    %s132 = sphi 0, %s130
    %s133 = sphi 0, %s132
    %s147 = sphi 0, %s133
    %s151 = sphi 0, %s151
    %s153 = sphi 0, %s151
    %s154 = sphi 0, %s153
    %s168 = sphi 0, %s154
    %s172 = sphi 0, %s172
    %s174 = sphi 0, %s172
    %s175 = sphi 0, %s174
    %s189 = sphi 0, %s175
    %s197 = sphi 0, %s199
    %s200 = sphi 0, %s197
    %s201 = sphi 0, %s200
    %s217 = sphi 0, %s201
  $region4: #{gcn_forward_prepared.1} parent=0 // loop_header_branch
    %15 = sbr.rel (%p13) target = $region8
  $region5: #{gcn_forward_prepared.1} parent=0 // loop_body
    %s17 = ssub.s32 %s12, 1
    %s18 = ssub.s32 %s12, 2
    %s28 = sadd.s32 1, %s21
    %p29 = scmp.ge.s32.totalorder %s28, 1
    %s30 = scalar_select %p29, 0, %s28
    %s31 = sadd.s32 1, %s20
    %s32 = scalar_select %p29, %s31, %s20
    %p33 = scmp.ge.s32.totalorder %s32, 1
    %s34 = scalar_select %p33, 0, %s32
    %s35 = sadd.s32 1, %s19
    %s36 = scalar_select %p33, %s35, %s19
    %p37 = scmp.ge.s32.totalorder %s36, 2
    %s38 = scalar_select %p37, 0, %s36
    %s39 = ssub.s32 1, %s19
    %s40 = smul.u32 %s20, %s39
    %s41 = smul.u32 %s21, %s39
    %s42 = ssub.s32 1, %s38
    %s43 = smul.u32 %s34, %s42
    %s44 = smul.u32 %s30, %s42
    %s45 = ssub.s32 %s40, %s43
    %s46 = ssub.s32 %s41, %s44
    %s47 = sor.u32 %s45, %s46
    %p48 = scmp.eq.s32.totalorder %s47, 0
    %s50 = sadd.s32 %s49, 1
    %s51 = scalar_select %p48, %s49, %s50
    %p54 = pneg %p48
    %p55 = scmp.eq.s32.totalorder %s12, 1
    %p56 = por %p54, %p55
    %p57 = scmp.ne.s32.totalorder %s49, %s52
    %p58 = scmp.eq.s32.totalorder %s12, 0
    %p59 = por %p57, %p58
    %p60 = scmp.ne.s32.totalorder %s49, %s52
    %p61 = scmp.eq.s32.totalorder %s17, 1
    %p62 = por %p60, %p61
    %p63 = scmp.ne.s32.totalorder %s52, %s53
    %p64 = scmp.eq.s32.totalorder %s17, 0
    %p65 = por %p63, %p64
    %p66 = scmp.ne.s32.totalorder %s52, %s53
    %p67 = scmp.eq.s32.totalorder %s18, 1
    %p68 = por %p66, %p67
    %p70 = scmp.ne.s32.totalorder %s53, %s69
    %p71 = scmp.eq.s32.totalorder %s18, 0
    %p72 = por %p70, %p71
    %p73 = scmp.eq.s32.totalorder %s19, 0
    %p74 = scmp.eq.s32.totalorder %s20, 0
    %p75 = pnand %p73, %p74
    %p76 = pneg %p75
    %s77 = scalar_select %p76, %s21, 0
    %p78 = scmp.eq.s32.totalorder %s38, 0
    %p79 = scmp.eq.s32.totalorder %s34, 0
    %p80 = pnand %p78, %p79
    %p81 = pneg %p80
    %s82 = scalar_select %p81, %s30, 0
    %s83 = ssub.s32 %s77, %s82
    %p84 = scmp.eq.s32.totalorder %s83, 0
    %s86 = sadd.s32 %s85, 1
    %s87 = scalar_select %p84, %s85, %s86
    %p90 = pneg %p84
    %p91 = scmp.eq.s32.totalorder %s12, 1
    %p92 = por %p90, %p91
    %p93 = scmp.ne.s32.totalorder %s85, %s88
    %p94 = scmp.eq.s32.totalorder %s12, 0
    %p95 = por %p93, %p94
    %p96 = scmp.ne.s32.totalorder %s85, %s88
    %p97 = scmp.eq.s32.totalorder %s17, 1
    %p98 = por %p96, %p97
    %p99 = scmp.ne.s32.totalorder %s88, %s89
    %p100 = scmp.eq.s32.totalorder %s17, 0
    %p101 = por %p99, %p100
    %p102 = scmp.ne.s32.totalorder %s88, %s89
    %p103 = scmp.eq.s32.totalorder %s18, 1
    %p104 = por %p102, %p103
    %p106 = scmp.ne.s32.totalorder %s89, %s105
    %p107 = scmp.eq.s32.totalorder %s18, 0
    %p108 = por %p106, %p107
    %s110 = sadd.s32 %s109, 1
    %p113 = scmp.eq.s32.totalorder %s12, 1
    %p114 = scmp.ne.s32.totalorder %s109, %s111
    %p115 = scmp.eq.s32.totalorder %s12, 0
    %p116 = por %p114, %p115
    %p117 = scmp.ne.s32.totalorder %s109, %s111
    %p118 = scmp.eq.s32.totalorder %s17, 1
    %p119 = por %p117, %p118
    %p120 = scmp.ne.s32.totalorder %s111, %s112
    %p121 = scmp.eq.s32.totalorder %s17, 0
    %p122 = por %p120, %p121
    %p123 = scmp.ne.s32.totalorder %s111, %s112
    %p124 = scmp.eq.s32.totalorder %s18, 1
    %p125 = por %p123, %p124
    %p127 = scmp.ne.s32.totalorder %s112, %s126
    %p128 = scmp.eq.s32.totalorder %s18, 0
    %p129 = por %p127, %p128
    %s131 = sadd.s32 %s130, 1
    %p134 = scmp.eq.s32.totalorder %s12, 1
    %p135 = scmp.ne.s32.totalorder %s130, %s132
    %p136 = scmp.eq.s32.totalorder %s12, 0
    %p137 = por %p135, %p136
    %p138 = scmp.ne.s32.totalorder %s130, %s132
    %p139 = scmp.eq.s32.totalorder %s17, 1
    %p140 = por %p138, %p139
    %p141 = scmp.ne.s32.totalorder %s132, %s133
    %p142 = scmp.eq.s32.totalorder %s17, 0
    %p143 = por %p141, %p142
    %p144 = scmp.ne.s32.totalorder %s132, %s133
    %p145 = scmp.eq.s32.totalorder %s18, 1
    %p146 = por %p144, %p145
    %p148 = scmp.ne.s32.totalorder %s133, %s147
    %p149 = scmp.eq.s32.totalorder %s18, 0
    %p150 = por %p148, %p149
    %s152 = sadd.s32 %s151, 1
    %p155 = scmp.eq.s32.totalorder %s12, 1
    %p156 = scmp.ne.s32.totalorder %s151, %s153
    %p157 = scmp.eq.s32.totalorder %s12, 0
    %p158 = por %p156, %p157
    %p159 = scmp.ne.s32.totalorder %s151, %s153
    %p160 = scmp.eq.s32.totalorder %s17, 1
    %p161 = por %p159, %p160
    %p162 = scmp.ne.s32.totalorder %s153, %s154
    %p163 = scmp.eq.s32.totalorder %s17, 0
    %p164 = por %p162, %p163
    %p165 = scmp.ne.s32.totalorder %s153, %s154
    %p166 = scmp.eq.s32.totalorder %s18, 1
    %p167 = por %p165, %p166
    %p169 = scmp.ne.s32.totalorder %s154, %s168
    %p170 = scmp.eq.s32.totalorder %s18, 0
    %p171 = por %p169, %p170
    %s173 = sadd.s32 %s172, 1
    %p176 = scmp.eq.s32.totalorder %s12, 1
    %p177 = scmp.ne.s32.totalorder %s172, %s174
    %p178 = scmp.eq.s32.totalorder %s12, 0
    %p179 = por %p177, %p178
    %p180 = scmp.ne.s32.totalorder %s172, %s174
    %p181 = scmp.eq.s32.totalorder %s17, 1
    %p182 = por %p180, %p181
    %p183 = scmp.ne.s32.totalorder %s174, %s175
    %p184 = scmp.eq.s32.totalorder %s17, 0
    %p185 = por %p183, %p184
    %p186 = scmp.ne.s32.totalorder %s174, %s175
    %p187 = scmp.eq.s32.totalorder %s18, 1
    %p188 = por %p186, %p187
    %p190 = scmp.ne.s32.totalorder %s175, %s189
    %p191 = scmp.eq.s32.totalorder %s18, 0
    %p192 = por %p190, %p191
    %s193 = smul.u32 %s19, %s20
    %s194 = smul.u32 %s38, %s34
    %s195 = ssub.s32 %s193, %s194
    %p196 = scmp.eq.s32.totalorder %s195, 0
    %s198 = sadd.s32 %s197, 1
    %s199 = scalar_select %p196, %s197, %s198
    %p202 = pneg %p196
    %p203 = scmp.eq.s32.totalorder %s12, 1
    %p204 = por %p202, %p203
    %p205 = scmp.ne.s32.totalorder %s197, %s200
    %p206 = scmp.eq.s32.totalorder %s12, 0
    %p207 = por %p205, %p206
    %p208 = scmp.ne.s32.totalorder %s197, %s200
    %p209 = scmp.eq.s32.totalorder %s17, 1
    %p210 = por %p208, %p209
    %p211 = scmp.ne.s32.totalorder %s200, %s201
    %p212 = scmp.eq.s32.totalorder %s17, 0
    %p213 = por %p211, %p212
    %p214 = scmp.ne.s32.totalorder %s200, %s201
    %p215 = scmp.eq.s32.totalorder %s18, 1
    %p216 = por %p214, %p215
    %p218 = scmp.ne.s32.totalorder %s201, %s217
    %p219 = scmp.eq.s32.totalorder %s18, 0
    %p220 = por %p218, %p219
    %p221 = scmp.le.s32.totalorder 1, %s12
    %p222 = scmp.lt.s32.totalorder %s12, 3
    %p223 = pnand %p221, %p222
    %p224 = pneg %p223
    // Predicated region
    $region9: #{gcn_forward_prepared.1} parent=5 // pred_check
      _
    $region10: #{gcn_forward_prepared.1} parent=5 // pred_check_branch
      %226 = sbr.rel (%p223) target = $region12
    $region11: #{gcn_forward_prepared.1} parent=5 // pred_region
      %s227 = ssub.s32 %s12, 1
      // Predicated region
      $region13: #{gcn_forward_prepared.1} parent=11 // pred_check
        %p228 = pneg %p122
      $region14: #{gcn_forward_prepared.1} parent=11 // pred_check_branch
        %230 = sbr.rel (%p228) target = $region16
      $region15: #{gcn_forward_prepared.1} parent=11 // pred_region
        _
      $region16: #{gcn_forward_prepared.1} parent=11 // pred_fallthru
        _
      // Predicated region
      $region17: #{gcn_forward_prepared.1} parent=11 // pred_check
        %p231 = pneg %p143
      $region18: #{gcn_forward_prepared.1} parent=11 // pred_check_branch
        %233 = sbr.rel (%p231) target = $region20
      $region19: #{gcn_forward_prepared.1} parent=11 // pred_region
        _
      $region20: #{gcn_forward_prepared.1} parent=11 // pred_fallthru
        _
      // Predicated region
      $region21: #{gcn_forward_prepared.1} parent=11 // pred_check
        %p234 = pneg %p164
      $region22: #{gcn_forward_prepared.1} parent=11 // pred_check_branch
        %236 = sbr.rel (%p234) target = $region24
      $region23: #{gcn_forward_prepared.1} parent=11 // pred_region
        _
      $region24: #{gcn_forward_prepared.1} parent=11 // pred_fallthru
        _
      // Predicated region
      $region25: #{gcn_forward_prepared.1} parent=11 // pred_check
        %p237 = pneg %p185
      $region26: #{gcn_forward_prepared.1} parent=11 // pred_check_branch
        %239 = sbr.rel (%p237) target = $region28
      $region27: #{gcn_forward_prepared.1} parent=11 // pred_region
        _
      $region28: #{gcn_forward_prepared.1} parent=11 // pred_fallthru
        _
    $region12: #{gcn_forward_prepared.1} parent=5 // pred_fallthru
      _
    %p240 = scmp.lt.s32.totalorder %s12, 2
    // Predicated region
    $region29: #{gcn_forward_prepared.1} parent=5 // pred_check
      %p241 = pneg %p240
    $region30: #{gcn_forward_prepared.1} parent=5 // pred_check_branch
      %243 = sbr.rel (%p241) target = $region32
    $region31: #{gcn_forward_prepared.1} parent=5 // pred_region
      // Predicated region
      $region33: #{gcn_forward_prepared.1} parent=31 // pred_check
        %p244 = pneg %p59
      $region34: #{gcn_forward_prepared.1} parent=31 // pred_check_branch
        %246 = sbr.rel (%p244) target = $region36
      $region35: #{gcn_forward_prepared.1} parent=31 // pred_region
        %s247 = ssub.s32 1, %s19
        %s248 = smul.u32 %s20, %s247
        %s249 = smul.u32 %s21, %s247
        %s250 = smul.u32 16, %s248
        %p251 = scmp.lt.s32.totalorder %s250, 15
        %s252 = scalar_select %p251, %s250, 15
        %p253 = scmp.lt.s32.totalorder %s249, 0
        %s254 = scalar_select %p253, %s249, 0
        %s255 = sadd.s32 %s254, %s252
        %s256 = smul.addr %s255, 4
        %s257 = scalar_lea.vmem %s0, %s256
        %s258 = ssub.s32 1, %s19
        %s259 = smul.u32 %s20, %s258
        %s260 = smul.u32 %s21, %s258
        %s261 = smul.u32 16, %s259
      $region36: #{gcn_forward_prepared.1} parent=31 // pred_fallthru
        _
      // Predicated region
      $region37: #{gcn_forward_prepared.1} parent=31 // pred_check
        %p262 = pneg %p95
      $region38: #{gcn_forward_prepared.1} parent=31 // pred_check_branch
        %264 = sbr.rel (%p262) target = $region40
      $region39: #{gcn_forward_prepared.1} parent=31 // pred_region
        %p265 = scmp.eq.s32.totalorder %s19, 0
        %p266 = scmp.eq.s32.totalorder %s20, 0
        %p267 = pnand %p265, %p266
        %p268 = pneg %p267
        %s269 = scalar_select %p268, %s21, 0
        %s270 = smul.u32 16, %s269
        %p271 = scmp.lt.s32.totalorder %s270, 15
        %s272 = scalar_select %p271, %s270, 15
        %s273 = smul.addr %s272, 4
        %s274 = scalar_lea.vmem %s1, %s273
        %p275 = scmp.eq.s32.totalorder %s19, 0
        %p276 = scmp.eq.s32.totalorder %s20, 0
        %p277 = pnand %p275, %p276
        %p278 = pneg %p277
        %s279 = scalar_select %p278, %s21, 0
        %s280 = smul.u32 16, %s279
      $region40: #{gcn_forward_prepared.1} parent=31 // pred_fallthru
        _
    $region32: #{gcn_forward_prepared.1} parent=5 // pred_fallthru
      _
    %p281 = scmp.le.s32.totalorder 1, %s12
    %p282 = scmp.lt.s32.totalorder %s12, 3
    %p283 = pnand %p281, %p282
    %p284 = pneg %p283
    // Predicated region
    $region41: #{gcn_forward_prepared.1} parent=5 // pred_check
      _
    $region42: #{gcn_forward_prepared.1} parent=5 // pred_check_branch
      %286 = sbr.rel (%p283) target = $region44
    $region43: #{gcn_forward_prepared.1} parent=5 // pred_region
      %s287 = ssub.s32 %s12, 1
      %s288 = ssub.s32 1, %s22
      %s289 = smul.u32 %s23, %s288
      %s290 = smul.u32 %s24, %s288
      %s291 = smul.u32 16, %s289
      %p292 = scmp.lt.s32.totalorder %s291, 15
      %s293 = scalar_select %p292, %s291, 15
      %p294 = scmp.lt.s32.totalorder %s290, 0
      %s295 = scalar_select %p294, %s290, 0
      %s296 = sadd.s32 %s295, %s293
      %s297 = smul.addr %s296, 4
      %s298 = scalar_lea.vmem %s0, %s297
      %p299 = pneg %p65
      %p300 = pneg %p62
      %p301 = scmp.eq.s32.totalorder %s22, 0
      %p302 = scmp.eq.s32.totalorder %s23, 0
      %p303 = pnand %p301, %p302
      %p304 = pneg %p303
      %s305 = scalar_select %p304, %s24, 0
      %s306 = smul.u32 16, %s305
      %p307 = scmp.lt.s32.totalorder %s306, 15
      %s308 = scalar_select %p307, %s306, 15
      %s309 = smul.addr %s308, 4
      %s310 = scalar_lea.vmem %s1, %s309
      %p311 = pneg %p101
      %p312 = pneg %p98
      %p313 = pneg %p122
      %p314 = pneg %p119
      %p315 = pneg %p143
      %p316 = pneg %p140
      %p317 = pneg %p164
      %p318 = pneg %p161
      %p319 = pneg %p185
      %p320 = pneg %p182
      %p321 = pneg %p213
      %p322 = pneg %p210
      %s323 = smul.u32 %s22, %s23
      %s324 = smul.u32 16, %s323
      %p325 = scmp.lt.s32.totalorder %s324, 15
      %s326 = scalar_select %p325, %s324, 15
      %s327 = smul.addr %s326, 8
      %s328 = scalar_lea.vmem %s6, %s327
      %s329 = ssub.s32 1, %s22
      %s330 = smul.u32 %s23, %s329
      %s331 = smul.u32 %s24, %s329
      %s332 = smul.u32 16, %s330
      %p333 = scmp.lt.s32.totalorder %s332, 15
      %s334 = scalar_select %p333, %s332, 15
      %p335 = scmp.lt.s32.totalorder %s331, 0
      %s336 = scalar_select %p335, %s331, 0
      %s337 = sadd.s32 %s336, %s334
      %s338 = smul.addr %s337, 4
      %s339 = scalar_lea.vmem %s0, %s338
      %s340 = ssub.s32 1, %s22
      %s341 = smul.u32 %s23, %s340
      %s342 = smul.u32 %s24, %s340
      %s343 = smul.u32 16, %s341
      %p344 = scmp.eq.s32.totalorder %s22, 0
      %p345 = scmp.eq.s32.totalorder %s23, 0
      %p346 = pnand %p344, %p345
      %p347 = pneg %p346
      %s348 = scalar_select %p347, %s24, 0
      %s349 = smul.u32 16, %s348
      %p350 = scmp.lt.s32.totalorder %s349, 15
      %s351 = scalar_select %p350, %s349, 15
      %s352 = smul.addr %s351, 4
      %s353 = scalar_lea.vmem %s1, %s352
      %p354 = scmp.eq.s32.totalorder %s22, 0
      %p355 = scmp.eq.s32.totalorder %s23, 0
      %p356 = pnand %p354, %p355
      %p357 = pneg %p356
      %s358 = scalar_select %p357, %s24, 0
      %s359 = smul.u32 16, %s358
      %s360 = smul.u32 %s22, %s23
      %s361 = smul.u32 16, %s360
      %p362 = scmp.lt.s32.totalorder %s361, 15
      %s363 = scalar_select %p362, %s361, 15
      %s364 = smul.addr %s363, 8
      %s365 = scalar_lea.vmem %s6, %s364
      %s366 = smul.u32 %s22, %s23
      %s367 = smul.u32 16, %s366
      %s369 = smul.u32 %s23, 128
      %s370 = smul.u32 %s24, 128
      %p371 = scmp.eq.s32.totalorder %s23, 0
      %p372 = scmp.eq.s32.totalorder %s22, 0
      %p373 = pnand %p371, %p372
      %p374 = pneg %p373
      // Predicated region
      $region45: #{gcn_forward_prepared.1} parent=43 // pred_check
        _
      $region46: #{gcn_forward_prepared.1} parent=43 // pred_check_branch
        %376 = sbr.rel (%p373) target = $region48
      $region47: #{gcn_forward_prepared.1} parent=43 // pred_region
        %v377 = vld [vmem:[%s353] sm:$0xf]
        %v378 = vld [vmem:[%s353 + $0x4] sm:$0xf]
        %v379 = vld [vmem:[%s353 + $0x8] sm:$0xf]
        %v380 = vld [vmem:[%s353 + $0xc] sm:$0xf]
        %v381 = vld [vmem:[%s353 + $0x10] sm:$0xf]
        %v382 = vld [vmem:[%s353 + $0x14] sm:$0xf]
        %v383 = vld [vmem:[%s353 + $0x18] sm:$0xf]
        %v384 = vld [vmem:[%s353 + $0x1c] sm:$0xf]
        %v385 = vld [vmem:[%s353 + $0x20] sm:$0xf]
        %v386 = vld [vmem:[%s353 + $0x24] sm:$0xf]
        %v387 = vld [vmem:[%s353 + $0x28] sm:$0xf]
        %v388 = vld [vmem:[%s353 + $0x2c] sm:$0xf]
        %v389 = vld [vmem:[%s353 + $0x30] sm:$0xf]
        %v390 = vld [vmem:[%s353 + $0x34] sm:$0xf]
        %v391 = vld [vmem:[%s353 + $0x38] sm:$0xf]
        %v392 = vld [vmem:[%s353 + $0x3c] sm:$0xf]
        %v393 = vld [vmem:[%s2] sm:$0xf]
        %v394 = vld [vmem:[%s2 + $0x4] sm:$0xf]
        %v395 = vld [vmem:[%s2 + $0x8] sm:$0xf]
        %v396 = vld [vmem:[%s2 + $0xc] sm:$0xf]
        %v397 = vld [vmem:[%s2 + $0x10] sm:$0xf]
        %v398 = vld [vmem:[%s2 + $0x14] sm:$0xf]
        %v399 = vld [vmem:[%s2 + $0x18] sm:$0xf]
        %v400 = vld [vmem:[%s2 + $0x1c] sm:$0xf]
        %v401 = vld [vmem:[%s2 + $0x20] sm:$0xf]
        %v402 = vld [vmem:[%s2 + $0x24] sm:$0xf]
        %v403 = vld [vmem:[%s2 + $0x28] sm:$0xf]
        %v404 = vld [vmem:[%s2 + $0x2c] sm:$0xf]
        %v405 = vld [vmem:[%s2 + $0x30] sm:$0xf]
        %v406 = vld [vmem:[%s2 + $0x34] sm:$0xf]
        %v407 = vld [vmem:[%s2 + $0x38] sm:$0xf]
        %v408 = vld [vmem:[%s2 + $0x3c] sm:$0xf]
        %v425 = vunpack.c.l.b16 %v377
        %v426 = vunpack.c.l.b16 %v378
        %v427 = vunpack.c.l.b16 %v379
        %v428 = vunpack.c.l.b16 %v380
        %v429 = vunpack.c.l.b16 %v381
        %v430 = vunpack.c.l.b16 %v382
        %v431 = vunpack.c.l.b16 %v383
        %v432 = vunpack.c.l.b16 %v384
        %v433 = vunpack.c.l.b16 %v385
        %v434 = vunpack.c.l.b16 %v386
        %v435 = vunpack.c.l.b16 %v387
        %v436 = vunpack.c.l.b16 %v388
        %v437 = vunpack.c.l.b16 %v389
        %v438 = vunpack.c.l.b16 %v390
        %v439 = vunpack.c.l.b16 %v391
        %v440 = vunpack.c.l.b16 %v392
        %v441 = vpack.c.b16 %v426, %v425
        %v442 = vpack.c.b16 %v428, %v427
        %v443 = vpack.c.b16 %v430, %v429
        %v444 = vpack.c.b16 %v432, %v431
        %v445 = vpack.c.b16 %v434, %v433
        %v446 = vpack.c.b16 %v436, %v435
        %v447 = vpack.c.b16 %v438, %v437
        %v448 = vpack.c.b16 %v440, %v439
        %v473 = vunpack.c.l.b16 %v393
        %v474 = vunpack.c.l.b16 %v394
        %v475 = vunpack.c.l.b16 %v395
        %v476 = vunpack.c.l.b16 %v396
        %v477 = vunpack.c.l.b16 %v397
        %v478 = vunpack.c.l.b16 %v398
        %v479 = vunpack.c.l.b16 %v399
        %v480 = vunpack.c.l.b16 %v400
        %v481 = vunpack.c.l.b16 %v401
        %v482 = vunpack.c.l.b16 %v402
        %v483 = vunpack.c.l.b16 %v403
        %v484 = vunpack.c.l.b16 %v404
        %v485 = vunpack.c.l.b16 %v405
        %v486 = vunpack.c.l.b16 %v406
        %v487 = vunpack.c.l.b16 %v407
        %v488 = vunpack.c.l.b16 %v408
        %v489 = vpack.c.b16 %v474, %v473
        %v490 = vpack.c.b16 %v476, %v475
        %v491 = vpack.c.b16 %v478, %v477
        %v492 = vpack.c.b16 %v480, %v479
        %v493 = vpack.c.b16 %v482, %v481
        %v494 = vpack.c.b16 %v484, %v483
        %v495 = vpack.c.b16 %v486, %v485
        %v496 = vpack.c.b16 %v488, %v487
        %505 = vmatprep.subr.bf16.mxu0 0
        %506 = vmatpush1.bf16.msra.mxu0 %v489
        %507 = vmatprep.subr.bf16.mxu0 0
        %508 = vmatpush1.bf16.msra.mxu0 %v490
        %509 = vmatprep.subr.bf16.mxu0 0
        %510 = vmatpush1.bf16.msra.mxu0 %v491
        %511 = vmatprep.subr.bf16.mxu0 0
        %512 = vmatpush1.bf16.msra.mxu0 %v492
        %513 = vmatprep.subr.bf16.mxu0 0
        %514 = vmatpush1.bf16.msra.mxu0 %v493
        %515 = vmatprep.subr.bf16.mxu0 0
        %516 = vmatpush1.bf16.msra.mxu0 %v494
        %517 = vmatprep.subr.bf16.mxu0 0
        %518 = vmatpush1.bf16.msra.mxu0 %v495
        %519 = vmatprep.subr.bf16.mxu0 0
        %520 = vmatpush1.bf16.msra.mxu0 %v496
        %521 = vmatprep.subr.bf16.mxu0 0
        %522 = vmatpush1.bf16.msra.mxu0 0
        %523 = vmatprep.subr.bf16.mxu0 0
        %524 = vmatpush1.bf16.msra.mxu0 0
        %525 = vmatprep.subr.bf16.mxu0 0
        %526 = vmatpush1.bf16.msra.mxu0 0
        %527 = vmatprep.subr.bf16.mxu0 0
        %528 = vmatpush1.bf16.msra.mxu0 0
        %529 = vmatprep.subr.bf16.mxu0 0
        %530 = vmatpush1.bf16.msra.mxu0 0
        %531 = vmatprep.subr.bf16.mxu0 0
        %532 = vmatpush1.bf16.msra.mxu0 0
        %533 = vmatprep.subr.bf16.mxu0 0
        %534 = vmatpush1.bf16.msra.mxu0 0
        %535 = vmatprep.subr.bf16.mxu0 0
        %536 = vmatpush1.bf16.msra.mxu0 0
        %537 = vmatprep.mubr.bf16.mxu0 0
        %538 = vmatmul.mubr.bf16.gmra.mrb[0].mxu0 %v441
        %v539 = vpop.f32.mrb[0].mxu0
        %v540 = vadd.f32 0.0, %v539
        %v541 = vpop.f32.mrb[0].mxu0
        %v542 = vpop.f32.mrb[0].mxu0
        %v543 = vadd.f32 0.0, %v542
        %v544 = vpop.f32.mrb[0].mxu0
        %545 = vmatprep.mubr.bf16.mxu0 0
        %546 = vmatmul.mubr.bf16.gmra.mrb[0].mxu0 %v442
        %v547 = vpop.f32.mrb[0].mxu0
        %v548 = vadd.f32 0.0, %v547
        %v549 = vpop.f32.mrb[0].mxu0
        %v550 = vpop.f32.mrb[0].mxu0
        %v551 = vadd.f32 0.0, %v550
        %v552 = vpop.f32.mrb[0].mxu0
        %553 = vmatprep.mubr.bf16.mxu0 0
        %554 = vmatmul.mubr.bf16.gmra.mrb[0].mxu0 %v443
        %v555 = vpop.f32.mrb[0].mxu0
        %v556 = vadd.f32 0.0, %v555
        %v557 = vpop.f32.mrb[0].mxu0
        %v558 = vpop.f32.mrb[0].mxu0
        %v559 = vadd.f32 0.0, %v558
        %v560 = vpop.f32.mrb[0].mxu0
        %561 = vmatprep.mubr.bf16.mxu0 0
        %562 = vmatmul.mubr.bf16.gmra.mrb[0].mxu0 %v444
        %v563 = vpop.f32.mrb[0].mxu0
        %v564 = vadd.f32 0.0, %v563
        %v565 = vpop.f32.mrb[0].mxu0
        %v566 = vpop.f32.mrb[0].mxu0
        %v567 = vadd.f32 0.0, %v566
        %v568 = vpop.f32.mrb[0].mxu0
        %569 = vmatprep.mubr.bf16.mxu0 0
        %570 = vmatmul.mubr.bf16.gmra.mrb[0].mxu0 %v445
        %v571 = vpop.f32.mrb[0].mxu0
        %v572 = vadd.f32 0.0, %v571
        %v573 = vpop.f32.mrb[0].mxu0
        %v574 = vpop.f32.mrb[0].mxu0
        %v575 = vadd.f32 0.0, %v574
        %v576 = vpop.f32.mrb[0].mxu0
        %577 = vmatprep.mubr.bf16.mxu0 0
        %578 = vmatmul.mubr.bf16.gmra.mrb[0].mxu0 %v446
        %v579 = vpop.f32.mrb[0].mxu0
        %v580 = vadd.f32 0.0, %v579
        %v581 = vpop.f32.mrb[0].mxu0
        %v582 = vpop.f32.mrb[0].mxu0
        %v583 = vadd.f32 0.0, %v582
        %v584 = vpop.f32.mrb[0].mxu0
        %585 = vmatprep.mubr.bf16.mxu0 0
        %586 = vmatmul.mubr.bf16.gmra.mrb[0].mxu0 %v447
        %v587 = vpop.f32.mrb[0].mxu0
        %v588 = vadd.f32 0.0, %v587
        %v589 = vpop.f32.mrb[0].mxu0
        %v590 = vpop.f32.mrb[0].mxu0
        %v591 = vadd.f32 0.0, %v590
        %v592 = vpop.f32.mrb[0].mxu0
        %593 = vmatprep.mubr.bf16.mxu0 0
        %594 = vmatmul.mubr.bf16.gmra.mrb[0].mxu0 %v448
        %v595 = vpop.f32.mrb[0].mxu0
        %v596 = vadd.f32 0.0, %v595
        %v597 = vpop.f32.mrb[0].mxu0
        %v598 = vpop.f32.mrb[0].mxu0
        %v599 = vadd.f32 0.0, %v598
        %v600 = vpop.f32.mrb[0].mxu0
        %601 = vdwg.mxu0
        %v602 = vpack.c.bf16 %v543, %v540
        %v603 = vpack.c.bf16 %v551, %v548
        %v604 = vpack.c.bf16 %v559, %v556
        %v605 = vpack.c.bf16 %v567, %v564
        %v606 = vpack.c.bf16 %v575, %v572
        %v607 = vpack.c.bf16 %v583, %v580
        %v608 = vpack.c.bf16 %v591, %v588
        %v609 = vpack.c.bf16 %v599, %v596
        %s610 = sshra.s32 %s370, 4
        %s611 = sand.u32 %s370, 15
        %s612 = smul.addr %s610, 8
        %s613 = scalar_lea.vmem [#allocation2], %s612
        %614 = vst [vmem:[%s613] sm:$0xff] %v602
        %615 = vst [vmem:[%s613 + $0x8] sm:$0xff] %v603
        %616 = vst [vmem:[%s613 + $0x10] sm:$0xff] %v604
        %617 = vst [vmem:[%s613 + $0x18] sm:$0xff] %v605
        %618 = vst [vmem:[%s613 + $0x20] sm:$0xff] %v606
        %619 = vst [vmem:[%s613 + $0x28] sm:$0xff] %v607
        %620 = vst [vmem:[%s613 + $0x30] sm:$0xff] %v608
        %621 = vst [vmem:[%s613 + $0x38] sm:$0xff] %v609
      $region48: #{gcn_forward_prepared.1} parent=43 // pred_fallthru
        _
      %p622 = scmp.eq.s32.totalorder %s22, 1
      %p623 = pnand %p371, %p622
      %p624 = pneg %p623
      // Predicated region
      $region49: #{gcn_forward_prepared.1} parent=43 // pred_check
        _
      $region50: #{gcn_forward_prepared.1} parent=43 // pred_check_branch
        %626 = sbr.rel (%p623) target = $region52
      $region51: #{gcn_forward_prepared.1} parent=43 // pred_region
        %s627 = sshra.s32 %s370, 4
        %s628 = sand.u32 %s370, 15
        %s629 = smul.addr %s627, 8
        %s630 = scalar_lea.vmem [#allocation3], %s629
        %v631 = vld [vmem:[%s630] sm:$0xff]
        %v632 = vld [vmem:[%s630 + $0x8] sm:$0xff]
        %v633 = vld [vmem:[%s630 + $0x10] sm:$0xff]
        %v634 = vld [vmem:[%s630 + $0x18] sm:$0xff]
        %v635 = vld [vmem:[%s630 + $0x20] sm:$0xff]
        %v636 = vld [vmem:[%s630 + $0x28] sm:$0xff]
        %v637 = vld [vmem:[%s630 + $0x30] sm:$0xff]
        %v638 = vld [vmem:[%s630 + $0x38] sm:$0xff]
        %v639 = vld [vmem:[%s4] sm:$0xf]
        %v640 = vld [vmem:[%s4 + $0x4] sm:$0xf]
        %v641 = vld [vmem:[%s4 + $0x8] sm:$0xf]
        %v642 = vld [vmem:[%s4 + $0xc] sm:$0xf]
        %v643 = vld [vmem:[%s4 + $0x10] sm:$0xf]
        %v644 = vld [vmem:[%s4 + $0x14] sm:$0xf]
        %v645 = vld [vmem:[%s4 + $0x18] sm:$0xf]
        %v646 = vld [vmem:[%s4 + $0x1c] sm:$0xf]
        %v647 = vld [vmem:[%s4 + $0x20] sm:$0xf]
        %v648 = vld [vmem:[%s4 + $0x24] sm:$0xf]
        %v649 = vld [vmem:[%s4 + $0x28] sm:$0xf]
        %v650 = vld [vmem:[%s4 + $0x2c] sm:$0xf]
        %v651 = vld [vmem:[%s4 + $0x30] sm:$0xf]
        %v652 = vld [vmem:[%s4 + $0x34] sm:$0xf]
        %v653 = vld [vmem:[%s4 + $0x38] sm:$0xf]
        %v654 = vld [vmem:[%s4 + $0x3c] sm:$0xf]
        %v671 = vunpack.c.l.b16 %v639
        %v672 = vunpack.c.l.b16 %v640
        %v673 = vunpack.c.l.b16 %v641
        %v674 = vunpack.c.l.b16 %v642
        %v675 = vunpack.c.l.b16 %v643
        %v676 = vunpack.c.l.b16 %v644
        %v677 = vunpack.c.l.b16 %v645
        %v678 = vunpack.c.l.b16 %v646
        %v679 = vunpack.c.l.b16 %v647
        %v680 = vunpack.c.l.b16 %v648
        %v681 = vunpack.c.l.b16 %v649
        %v682 = vunpack.c.l.b16 %v650
        %v683 = vunpack.c.l.b16 %v651
        %v684 = vunpack.c.l.b16 %v652
        %v685 = vunpack.c.l.b16 %v653
        %v686 = vunpack.c.l.b16 %v654
        %v687 = vpack.c.b16 %v672, %v671
        %v688 = vpack.c.b16 %v674, %v673
        %v689 = vpack.c.b16 %v676, %v675
        %v690 = vpack.c.b16 %v678, %v677
        %v691 = vpack.c.b16 %v680, %v679
        %v692 = vpack.c.b16 %v682, %v681
        %v693 = vpack.c.b16 %v684, %v683
        %v694 = vpack.c.b16 %v686, %v685
        %703 = vmatprep.subr.bf16.mxu0 0
        %704 = vmatpush1.bf16.msra.mxu0 %v687
        %705 = vmatprep.subr.bf16.mxu0 0
        %706 = vmatpush1.bf16.msra.mxu0 %v688
        %707 = vmatprep.subr.bf16.mxu0 0
        %708 = vmatpush1.bf16.msra.mxu0 %v689
        %709 = vmatprep.subr.bf16.mxu0 0
        %710 = vmatpush1.bf16.msra.mxu0 %v690
        %711 = vmatprep.subr.bf16.mxu0 0
        %712 = vmatpush1.bf16.msra.mxu0 %v691
        %713 = vmatprep.subr.bf16.mxu0 0
        %714 = vmatpush1.bf16.msra.mxu0 %v692
        %715 = vmatprep.subr.bf16.mxu0 0
        %716 = vmatpush1.bf16.msra.mxu0 %v693
        %717 = vmatprep.subr.bf16.mxu0 0
        %718 = vmatpush1.bf16.msra.mxu0 %v694
        %719 = vmatprep.subr.bf16.mxu0 0
        %720 = vmatpush1.bf16.msra.mxu0 0
        %721 = vmatprep.subr.bf16.mxu0 0
        %722 = vmatpush1.bf16.msra.mxu0 0
        %723 = vmatprep.subr.bf16.mxu0 0
        %724 = vmatpush1.bf16.msra.mxu0 0
        %725 = vmatprep.subr.bf16.mxu0 0
        %726 = vmatpush1.bf16.msra.mxu0 0
        %727 = vmatprep.subr.bf16.mxu0 0
        %728 = vmatpush1.bf16.msra.mxu0 0
        %729 = vmatprep.subr.bf16.mxu0 0
        %730 = vmatpush1.bf16.msra.mxu0 0
        %731 = vmatprep.subr.bf16.mxu0 0
        %732 = vmatpush1.bf16.msra.mxu0 0
        %733 = vmatprep.subr.bf16.mxu0 0
        %734 = vmatpush1.bf16.msra.mxu0 0
        %735 = vmatprep.mubr.bf16.mxu0 0
        %736 = vmatmul.mubr.bf16.gmra.mrb[0].mxu0 %v631
        %v737 = vpop.f32.mrb[0].mxu0
        %v738 = vadd.f32 0.0, %v737
        %v739 = vpop.f32.mrb[0].mxu0
        %v740 = vpop.f32.mrb[0].mxu0
        %v741 = vadd.f32 0.0, %v740
        %v742 = vpop.f32.mrb[0].mxu0
        %743 = vmatprep.mubr.bf16.mxu0 0
        %744 = vmatmul.mubr.bf16.gmra.mrb[0].mxu0 %v632
        %v745 = vpop.f32.mrb[0].mxu0
        %v746 = vadd.f32 0.0, %v745
        %v747 = vpop.f32.mrb[0].mxu0
        %v748 = vpop.f32.mrb[0].mxu0
        %v749 = vadd.f32 0.0, %v748
        %v750 = vpop.f32.mrb[0].mxu0
        %751 = vmatprep.mubr.bf16.mxu0 0
        %752 = vmatmul.mubr.bf16.gmra.mrb[0].mxu0 %v633
        %v753 = vpop.f32.mrb[0].mxu0
        %v754 = vadd.f32 0.0, %v753
        %v755 = vpop.f32.mrb[0].mxu0
        %v756 = vpop.f32.mrb[0].mxu0
        %v757 = vadd.f32 0.0, %v756
        %v758 = vpop.f32.mrb[0].mxu0
        %759 = vmatprep.mubr.bf16.mxu0 0
        %760 = vmatmul.mubr.bf16.gmra.mrb[0].mxu0 %v634
        %v761 = vpop.f32.mrb[0].mxu0
        %v762 = vadd.f32 0.0, %v761
        %v763 = vpop.f32.mrb[0].mxu0
        %v764 = vpop.f32.mrb[0].mxu0
        %v765 = vadd.f32 0.0, %v764
        %v766 = vpop.f32.mrb[0].mxu0
        %767 = vmatprep.mubr.bf16.mxu0 0
        %768 = vmatmul.mubr.bf16.gmra.mrb[0].mxu0 %v635
        %v769 = vpop.f32.mrb[0].mxu0
        %v770 = vadd.f32 0.0, %v769
        %v771 = vpop.f32.mrb[0].mxu0
        %v772 = vpop.f32.mrb[0].mxu0
        %v773 = vadd.f32 0.0, %v772
        %v774 = vpop.f32.mrb[0].mxu0
        %775 = vmatprep.mubr.bf16.mxu0 0
        %776 = vmatmul.mubr.bf16.gmra.mrb[0].mxu0 %v636
        %v777 = vpop.f32.mrb[0].mxu0
        %v778 = vadd.f32 0.0, %v777
        %v779 = vpop.f32.mrb[0].mxu0
        %v780 = vpop.f32.mrb[0].mxu0
        %v781 = vadd.f32 0.0, %v780
        %v782 = vpop.f32.mrb[0].mxu0
        %783 = vmatprep.mubr.bf16.mxu0 0
        %784 = vmatmul.mubr.bf16.gmra.mrb[0].mxu0 %v637
        %v785 = vpop.f32.mrb[0].mxu0
        %v786 = vadd.f32 0.0, %v785
        %v787 = vpop.f32.mrb[0].mxu0
        %v788 = vpop.f32.mrb[0].mxu0
        %v789 = vadd.f32 0.0, %v788
        %v790 = vpop.f32.mrb[0].mxu0
        %791 = vmatprep.mubr.bf16.mxu0 0
        %792 = vmatmul.mubr.bf16.gmra.mrb[0].mxu0 %v638
        %v793 = vpop.f32.mrb[0].mxu0
        %v794 = vadd.f32 0.0, %v793
        %v795 = vpop.f32.mrb[0].mxu0
        %v796 = vpop.f32.mrb[0].mxu0
        %v797 = vadd.f32 0.0, %v796
        %v798 = vpop.f32.mrb[0].mxu0
        %799 = vdwg.mxu0
        %v800 = vpack.c.bf16 %v741, %v738
        %v801 = vpack.c.bf16 %v749, %v746
        %v802 = vpack.c.bf16 %v757, %v754
        %v803 = vpack.c.bf16 %v765, %v762
        %v804 = vpack.c.bf16 %v773, %v770
        %v805 = vpack.c.bf16 %v781, %v778
        %v806 = vpack.c.bf16 %v789, %v786
        %v807 = vpack.c.bf16 %v797, %v794
        %s808 = smul.addr %s627, 8
        %s809 = scalar_lea.vmem [#allocation2], %s808
        %810 = vst [vmem:[%s809] sm:$0xff] %v800
        %811 = vst [vmem:[%s809 + $0x8] sm:$0xff] %v801
        %812 = vst [vmem:[%s809 + $0x10] sm:$0xff] %v802
        %813 = vst [vmem:[%s809 + $0x18] sm:$0xff] %v803
        %814 = vst [vmem:[%s809 + $0x20] sm:$0xff] %v804
        %815 = vst [vmem:[%s809 + $0x28] sm:$0xff] %v805
        %816 = vst [vmem:[%s809 + $0x30] sm:$0xff] %v806
        %817 = vst [vmem:[%s809 + $0x38] sm:$0xff] %v807
      $region52: #{gcn_forward_prepared.1} parent=43 // pred_fallthru
        _
      %p818 = scmp.eq.s32.totalorder %s24, 0
      // Predicated region
      $region53: #{gcn_forward_prepared.1} parent=43 // pred_check
        %p819 = pneg %p818
      $region54: #{gcn_forward_prepared.1} parent=43 // pred_check_branch
        %821 = sbr.rel (%p819) target = $region56
      $region55: #{gcn_forward_prepared.1} parent=43 // pred_region
        %822 = vst [vmem:[%s365] sm:$0xff] 0.0
        %823 = vst [vmem:[%s365 + $0x8] sm:$0xff] 0.0
        %824 = vst [vmem:[%s365 + $0x10] sm:$0xff] 0.0
        %825 = vst [vmem:[%s365 + $0x18] sm:$0xff] 0.0
        %826 = vst [vmem:[%s365 + $0x20] sm:$0xff] 0.0
        %827 = vst [vmem:[%s365 + $0x28] sm:$0xff] 0.0
        %828 = vst [vmem:[%s365 + $0x30] sm:$0xff] 0.0
        %829 = vst [vmem:[%s365 + $0x38] sm:$0xff] 0.0
        %830 = vst [vmem:[%s365 + $0x40] sm:$0xff] 0.0
        %831 = vst [vmem:[%s365 + $0x48] sm:$0xff] 0.0
        %832 = vst [vmem:[%s365 + $0x50] sm:$0xff] 0.0
        %833 = vst [vmem:[%s365 + $0x58] sm:$0xff] 0.0
        %834 = vst [vmem:[%s365 + $0x60] sm:$0xff] 0.0
        %835 = vst [vmem:[%s365 + $0x68] sm:$0xff] 0.0
        %836 = vst [vmem:[%s365 + $0x70] sm:$0xff] 0.0
        %837 = vst [vmem:[%s365 + $0x78] sm:$0xff] 0.0
      $region56: #{gcn_forward_prepared.1} parent=43 // pred_fallthru
        _
      // Predicated region
      $region57: #{gcn_forward_prepared.1} parent=43 // pred_check
        %p838 = pneg %p372
      $region58: #{gcn_forward_prepared.1} parent=43 // pred_check_branch
        %840 = sbr.rel (%p838) target = $region60
      $region59: #{gcn_forward_prepared.1} parent=43 // pred_region
        %v841 = vld [vmem:[%s339] sm:$0xf]
        %v842 = vld [vmem:[%s339 + $0x4] sm:$0xf]
        %v843 = vld [vmem:[%s339 + $0x8] sm:$0xf]
        %v844 = vld [vmem:[%s339 + $0xc] sm:$0xf]
        %v845 = vld [vmem:[%s339 + $0x10] sm:$0xf]
        %v846 = vld [vmem:[%s339 + $0x14] sm:$0xf]
        %v847 = vld [vmem:[%s339 + $0x18] sm:$0xf]
        %v848 = vld [vmem:[%s339 + $0x1c] sm:$0xf]
        %v849 = vld [vmem:[%s339 + $0x20] sm:$0xf]
        %v850 = vld [vmem:[%s339 + $0x24] sm:$0xf]
        %v851 = vld [vmem:[%s339 + $0x28] sm:$0xf]
        %v852 = vld [vmem:[%s339 + $0x2c] sm:$0xf]
        %v853 = vld [vmem:[%s339 + $0x30] sm:$0xf]
        %v854 = vld [vmem:[%s339 + $0x34] sm:$0xf]
        %v855 = vld [vmem:[%s339 + $0x38] sm:$0xf]
        %v856 = vld [vmem:[%s339 + $0x3c] sm:$0xf]
        %v873 = vunpack.c.l.b16 %v841
        %v874 = vunpack.c.l.b16 %v842
        %v875 = vunpack.c.l.b16 %v843
        %v876 = vunpack.c.l.b16 %v844
        %v877 = vunpack.c.l.b16 %v845
        %v878 = vunpack.c.l.b16 %v846
        %v879 = vunpack.c.l.b16 %v847
        %v880 = vunpack.c.l.b16 %v848
        %v881 = vunpack.c.l.b16 %v849
        %v882 = vunpack.c.l.b16 %v850
        %v883 = vunpack.c.l.b16 %v851
        %v884 = vunpack.c.l.b16 %v852
        %v885 = vunpack.c.l.b16 %v853
        %v886 = vunpack.c.l.b16 %v854
        %v887 = vunpack.c.l.b16 %v855
        %v888 = vunpack.c.l.b16 %v856
        %v889 = vpack.c.b16 %v874, %v873
        %v890 = vpack.c.b16 %v876, %v875
        %v891 = vpack.c.b16 %v878, %v877
        %v892 = vpack.c.b16 %v880, %v879
        %v893 = vpack.c.b16 %v882, %v881
        %v894 = vpack.c.b16 %v884, %v883
        %v895 = vpack.c.b16 %v886, %v885
        %v896 = vpack.c.b16 %v888, %v887
        %s905 = sshra.s32 %s370, 7
        %s906 = sand.u32 %s370, 127
        %s907 = sshra.s32 %s369, 4
        %s908 = sand.u32 %s369, 15
        %s909 = sadd.s32 %s905, %s907
        %s910 = smul.addr %s909, 8
        %s911 = scalar_lea.vmem [#allocation4], %s910
        %912 = vst [vmem:[%s911] sm:$0xff] %v889
        %913 = vst [vmem:[%s911 + $0x8] sm:$0xff] %v890
        %914 = vst [vmem:[%s911 + $0x10] sm:$0xff] %v891
        %915 = vst [vmem:[%s911 + $0x18] sm:$0xff] %v892
        %916 = vst [vmem:[%s911 + $0x20] sm:$0xff] %v893
        %917 = vst [vmem:[%s911 + $0x28] sm:$0xff] %v894
        %918 = vst [vmem:[%s911 + $0x30] sm:$0xff] %v895
        %919 = vst [vmem:[%s911 + $0x38] sm:$0xff] %v896
      $region60: #{gcn_forward_prepared.1} parent=43 // pred_fallthru
        _
      %s920 = sshra.s32 %s370, 7
      %s921 = sand.u32 %s370, 127
      %s922 = sshra.s32 %s369, 4
      %s923 = sand.u32 %s369, 15
      %s924 = sadd.s32 %s920, %s922
      %s925 = smul.addr %s924, 8
      %s926 = scalar_lea.vmem [#allocation4], %s925
      %v927 = vld [vmem:[%s926] sm:$0xff]
      %v928 = vld [vmem:[%s926 + $0x8] sm:$0xff]
      %v929 = vld [vmem:[%s926 + $0x10] sm:$0xff]
      %v930 = vld [vmem:[%s926 + $0x18] sm:$0xff]
      %v931 = vld [vmem:[%s926 + $0x20] sm:$0xff]
      %v932 = vld [vmem:[%s926 + $0x28] sm:$0xff]
      %v933 = vld [vmem:[%s926 + $0x30] sm:$0xff]
      %v934 = vld [vmem:[%s926 + $0x38] sm:$0xff]
      %v935 = vld [vmem:[%s365] sm:$0xff]
      %v936 = vld [vmem:[%s365 + $0x8] sm:$0xff]
      %v937 = vld [vmem:[%s365 + $0x10] sm:$0xff]
      %v938 = vld [vmem:[%s365 + $0x18] sm:$0xff]
      %v939 = vld [vmem:[%s365 + $0x20] sm:$0xff]
      %v940 = vld [vmem:[%s365 + $0x28] sm:$0xff]
      %v941 = vld [vmem:[%s365 + $0x30] sm:$0xff]
      %v942 = vld [vmem:[%s365 + $0x38] sm:$0xff]
      %v943 = vld [vmem:[%s365 + $0x40] sm:$0xff]
      %v944 = vld [vmem:[%s365 + $0x48] sm:$0xff]
      %v945 = vld [vmem:[%s365 + $0x50] sm:$0xff]
      %v946 = vld [vmem:[%s365 + $0x58] sm:$0xff]
      %v947 = vld [vmem:[%s365 + $0x60] sm:$0xff]
      %v948 = vld [vmem:[%s365 + $0x68] sm:$0xff]
      %v949 = vld [vmem:[%s365 + $0x70] sm:$0xff]
      %v950 = vld [vmem:[%s365 + $0x78] sm:$0xff]
      %s951 = sshra.s32 %s370, 4
      %s952 = sand.u32 %s370, 15
      %s953 = smul.addr %s951, 8
      %s954 = scalar_lea.vmem [#allocation2], %s953
      %v955 = vld [vmem:[%s954] sm:$0xff]
      %v956 = vld [vmem:[%s954 + $0x8] sm:$0xff]
      %v957 = vld [vmem:[%s954 + $0x10] sm:$0xff]
      %v958 = vld [vmem:[%s954 + $0x18] sm:$0xff]
      %v959 = vld [vmem:[%s954 + $0x20] sm:$0xff]
      %v960 = vld [vmem:[%s954 + $0x28] sm:$0xff]
      %v961 = vld [vmem:[%s954 + $0x30] sm:$0xff]
      %v962 = vld [vmem:[%s954 + $0x38] sm:$0xff]
      %963 = vmatprep.subr.bf16.mxu0 0
      %964 = vmatpush1.bf16.msra.mxu0 %v955
      %965 = vmatprep.subr.bf16.mxu0 0
      %966 = vmatpush1.bf16.msra.mxu0 %v956
      %967 = vmatprep.subr.bf16.mxu0 0
      %968 = vmatpush1.bf16.msra.mxu0 %v957
      %969 = vmatprep.subr.bf16.mxu0 0
      %970 = vmatpush1.bf16.msra.mxu0 %v958
      %971 = vmatprep.subr.bf16.mxu0 0
      %972 = vmatpush1.bf16.msra.mxu0 %v959
      %973 = vmatprep.subr.bf16.mxu0 0
      %974 = vmatpush1.bf16.msra.mxu0 %v960
      %975 = vmatprep.subr.bf16.mxu0 0
      %976 = vmatpush1.bf16.msra.mxu0 %v961
      %977 = vmatprep.subr.bf16.mxu0 0
      %978 = vmatpush1.bf16.msra.mxu0 %v962
      %979 = vmatprep.subr.bf16.mxu0 0
      %980 = vmatpush1.bf16.msra.mxu0 0
      %981 = vmatprep.subr.bf16.mxu0 0
      %982 = vmatpush1.bf16.msra.mxu0 0
      %983 = vmatprep.subr.bf16.mxu0 0
      %984 = vmatpush1.bf16.msra.mxu0 0
      %985 = vmatprep.subr.bf16.mxu0 0
      %986 = vmatpush1.bf16.msra.mxu0 0
      %987 = vmatprep.subr.bf16.mxu0 0
      %988 = vmatpush1.bf16.msra.mxu0 0
      %989 = vmatprep.subr.bf16.mxu0 0
      %990 = vmatpush1.bf16.msra.mxu0 0
      %991 = vmatprep.subr.bf16.mxu0 0
      %992 = vmatpush1.bf16.msra.mxu0 0
      %993 = vmatprep.subr.bf16.mxu0 0
      %994 = vmatpush1.bf16.msra.mxu0 0
      %995 = vmatprep.mubr.bf16.mxu0 0
      %996 = vmatmul.mubr.bf16.gmra.mrb[0].mxu0 %v927
      %v997 = vpop.f32.mrb[0].mxu0
      %v998 = vadd.f32 0.0, %v997
      %v999 = vpop.f32.mrb[0].mxu0
      %v1000 = vpop.f32.mrb[0].mxu0
      %v1001 = vadd.f32 0.0, %v1000
      %v1002 = vpop.f32.mrb[0].mxu0
      %1003 = vmatprep.mubr.bf16.mxu0 0
      %1004 = vmatmul.mubr.bf16.gmra.mrb[0].mxu0 %v928
      %v1005 = vpop.f32.mrb[0].mxu0
      %v1006 = vadd.f32 0.0, %v1005
      %v1007 = vpop.f32.mrb[0].mxu0
      %v1008 = vpop.f32.mrb[0].mxu0
      %v1009 = vadd.f32 0.0, %v1008
      %v1010 = vpop.f32.mrb[0].mxu0
      %1011 = vmatprep.mubr.bf16.mxu0 0
      %1012 = vmatmul.mubr.bf16.gmra.mrb[0].mxu0 %v929
      %v1013 = vpop.f32.mrb[0].mxu0
      %v1014 = vadd.f32 0.0, %v1013
      %v1015 = vpop.f32.mrb[0].mxu0
      %v1016 = vpop.f32.mrb[0].mxu0
      %v1017 = vadd.f32 0.0, %v1016
      %v1018 = vpop.f32.mrb[0].mxu0
      %1019 = vmatprep.mubr.bf16.mxu0 0
      %1020 = vmatmul.mubr.bf16.gmra.mrb[0].mxu0 %v930
      %v1021 = vpop.f32.mrb[0].mxu0
      %v1022 = vadd.f32 0.0, %v1021
      %v1023 = vpop.f32.mrb[0].mxu0
      %v1024 = vpop.f32.mrb[0].mxu0
      %v1025 = vadd.f32 0.0, %v1024
      %v1026 = vpop.f32.mrb[0].mxu0
      %1027 = vmatprep.mubr.bf16.mxu0 0
      %1028 = vmatmul.mubr.bf16.gmra.mrb[0].mxu0 %v931
      %v1029 = vpop.f32.mrb[0].mxu0
      %v1030 = vadd.f32 0.0, %v1029
      %v1031 = vpop.f32.mrb[0].mxu0
      %v1032 = vpop.f32.mrb[0].mxu0
      %v1033 = vadd.f32 0.0, %v1032
      %v1034 = vpop.f32.mrb[0].mxu0
      %1035 = vmatprep.mubr.bf16.mxu0 0
      %1036 = vmatmul.mubr.bf16.gmra.mrb[0].mxu0 %v932
      %v1037 = vpop.f32.mrb[0].mxu0
      %v1038 = vadd.f32 0.0, %v1037
      %v1039 = vpop.f32.mrb[0].mxu0
      %v1040 = vpop.f32.mrb[0].mxu0
      %v1041 = vadd.f32 0.0, %v1040
      %v1042 = vpop.f32.mrb[0].mxu0
      %1043 = vmatprep.mubr.bf16.mxu0 0
      %1044 = vmatmul.mubr.bf16.gmra.mrb[0].mxu0 %v933
      %v1045 = vpop.f32.mrb[0].mxu0
      %v1046 = vadd.f32 0.0, %v1045
      %v1047 = vpop.f32.mrb[0].mxu0
      %v1048 = vpop.f32.mrb[0].mxu0
      %v1049 = vadd.f32 0.0, %v1048
      %v1050 = vpop.f32.mrb[0].mxu0
      %1051 = vmatprep.mubr.bf16.mxu0 0
      %1052 = vmatmul.mubr.bf16.gmra.mrb[0].mxu0 %v934
      %v1053 = vpop.f32.mrb[0].mxu0
      %v1054 = vadd.f32 0.0, %v1053
      %v1055 = vpop.f32.mrb[0].mxu0
      %v1056 = vpop.f32.mrb[0].mxu0
      %v1057 = vadd.f32 0.0, %v1056
      %v1058 = vpop.f32.mrb[0].mxu0
      %1059 = vdwg.mxu0
      %v1060 = vadd.f32 %v935, %v998
      %v1061 = vadd.f32 %v936, %v1001
      %v1062 = vadd.f32 %v937, %v1006
      %v1063 = vadd.f32 %v938, %v1009
      %v1064 = vadd.f32 %v939, %v1014
      %v1065 = vadd.f32 %v940, %v1017
      %v1066 = vadd.f32 %v941, %v1022
      %v1067 = vadd.f32 %v942, %v1025
      %v1068 = vadd.f32 %v943, %v1030
      %v1069 = vadd.f32 %v944, %v1033
      %v1070 = vadd.f32 %v945, %v1038
      %v1071 = vadd.f32 %v946, %v1041
      %v1072 = vadd.f32 %v947, %v1046
      %v1073 = vadd.f32 %v948, %v1049
      %v1074 = vadd.f32 %v949, %v1054
      %v1075 = vadd.f32 %v950, %v1057
      %1076 = vst [vmem:[%s365] sm:$0xff] %v1060
      %1077 = vst [vmem:[%s365 + $0x8] sm:$0xff] %v1061
      %1078 = vst [vmem:[%s365 + $0x10] sm:$0xff] %v1062
      %1079 = vst [vmem:[%s365 + $0x18] sm:$0xff] %v1063
      %1080 = vst [vmem:[%s365 + $0x20] sm:$0xff] %v1064
      %1081 = vst [vmem:[%s365 + $0x28] sm:$0xff] %v1065
      %1082 = vst [vmem:[%s365 + $0x30] sm:$0xff] %v1066
      %1083 = vst [vmem:[%s365 + $0x38] sm:$0xff] %v1067
      %1084 = vst [vmem:[%s365 + $0x40] sm:$0xff] %v1068
      %1085 = vst [vmem:[%s365 + $0x48] sm:$0xff] %v1069
      %1086 = vst [vmem:[%s365 + $0x50] sm:$0xff] %v1070
      %1087 = vst [vmem:[%s365 + $0x58] sm:$0xff] %v1071
      %1088 = vst [vmem:[%s365 + $0x60] sm:$0xff] %v1072
      %1089 = vst [vmem:[%s365 + $0x68] sm:$0xff] %v1073
      %1090 = vst [vmem:[%s365 + $0x70] sm:$0xff] %v1074
      %1091 = vst [vmem:[%s365 + $0x78] sm:$0xff] %v1075
      %p1092 = pnand %p818, %p372
      %p1093 = pneg %p1092
      // Predicated region
      $region61: #{gcn_forward_prepared.1} parent=43 // pred_check
        _
      $region62: #{gcn_forward_prepared.1} parent=43 // pred_check_branch
        %1095 = sbr.rel (%p1092) target = $region64
      $region63: #{gcn_forward_prepared.1} parent=43 // pred_region
        %v1096 = vld [vmem:[%s365] sm:$0xff]
        %v1097 = vld [vmem:[%s365 + $0x8] sm:$0xff]
        %v1098 = vld [vmem:[%s365 + $0x10] sm:$0xff]
        %v1099 = vld [vmem:[%s365 + $0x18] sm:$0xff]
        %v1100 = vld [vmem:[%s365 + $0x20] sm:$0xff]
        %v1101 = vld [vmem:[%s365 + $0x28] sm:$0xff]
        %v1102 = vld [vmem:[%s365 + $0x30] sm:$0xff]
        %v1103 = vld [vmem:[%s365 + $0x38] sm:$0xff]
        %v1104 = vld [vmem:[%s365 + $0x40] sm:$0xff]
        %v1105 = vld [vmem:[%s365 + $0x48] sm:$0xff]
        %v1106 = vld [vmem:[%s365 + $0x50] sm:$0xff]
        %v1107 = vld [vmem:[%s365 + $0x58] sm:$0xff]
        %v1108 = vld [vmem:[%s365 + $0x60] sm:$0xff]
        %v1109 = vld [vmem:[%s365 + $0x68] sm:$0xff]
        %v1110 = vld [vmem:[%s365 + $0x70] sm:$0xff]
        %v1111 = vld [vmem:[%s365 + $0x78] sm:$0xff]
        %v1112 = vld [vmem:[%s3] sm:$0x1]
        %v1114 = vlaneseq
        %v1115 = vshrl.u32 %v1114, 7
        %v1116 = vsub.s32 0, %v1115
        %v1117 = vrot.slane %v1112, %v1116
        %v1119 = vadd.f32 %v1096, %v1117
        %v1120 = vadd.f32 %v1097, %v1117
        %v1121 = vadd.f32 %v1098, %v1117
        %v1122 = vadd.f32 %v1099, %v1117
        %v1123 = vadd.f32 %v1100, %v1117
        %v1124 = vadd.f32 %v1101, %v1117
        %v1125 = vadd.f32 %v1102, %v1117
        %v1126 = vadd.f32 %v1103, %v1117
        %v1127 = vadd.f32 %v1104, %v1117
        %v1128 = vadd.f32 %v1105, %v1117
        %v1129 = vadd.f32 %v1106, %v1117
        %v1130 = vadd.f32 %v1107, %v1117
        %v1131 = vadd.f32 %v1108, %v1117
        %v1132 = vadd.f32 %v1109, %v1117
        %v1133 = vadd.f32 %v1110, %v1117
        %v1134 = vadd.f32 %v1111, %v1117
        %v1135 = vmax.f32 %v1119, 0.0
        %v1136 = vmax.f32 %v1120, 0.0
        %v1137 = vmax.f32 %v1121, 0.0
        %v1138 = vmax.f32 %v1122, 0.0
        %v1139 = vmax.f32 %v1123, 0.0
        %v1140 = vmax.f32 %v1124, 0.0
        %v1141 = vmax.f32 %v1125, 0.0
        %v1142 = vmax.f32 %v1126, 0.0
        %v1143 = vmax.f32 %v1127, 0.0
        %v1144 = vmax.f32 %v1128, 0.0
        %v1145 = vmax.f32 %v1129, 0.0
        %v1146 = vmax.f32 %v1130, 0.0
        %v1147 = vmax.f32 %v1131, 0.0
        %v1148 = vmax.f32 %v1132, 0.0
        %v1149 = vmax.f32 %v1133, 0.0
        %v1150 = vmax.f32 %v1134, 0.0
        %v1151 = vpack.c.bf16 %v1136, %v1135
        %v1152 = vpack.c.bf16 %v1138, %v1137
        %v1153 = vpack.c.bf16 %v1140, %v1139
        %v1154 = vpack.c.bf16 %v1142, %v1141
        %v1155 = vpack.c.bf16 %v1144, %v1143
        %v1156 = vpack.c.bf16 %v1146, %v1145
        %v1157 = vpack.c.bf16 %v1148, %v1147
        %v1158 = vpack.c.bf16 %v1150, %v1149
        %s1159 = smul.addr %s922, 8
        %s1160 = scalar_lea.vmem [#allocation3], %s1159
        %1161 = vst [vmem:[%s1160] sm:$0xff] %v1151
        %1162 = vst [vmem:[%s1160 + $0x8] sm:$0xff] %v1152
        %1163 = vst [vmem:[%s1160 + $0x10] sm:$0xff] %v1153
        %1164 = vst [vmem:[%s1160 + $0x18] sm:$0xff] %v1154
        %1165 = vst [vmem:[%s1160 + $0x20] sm:$0xff] %v1155
        %1166 = vst [vmem:[%s1160 + $0x28] sm:$0xff] %v1156
        %1167 = vst [vmem:[%s1160 + $0x30] sm:$0xff] %v1157
        %1168 = vst [vmem:[%s1160 + $0x38] sm:$0xff] %v1158
      $region64: #{gcn_forward_prepared.1} parent=43 // pred_fallthru
        _
      %p1169 = pnand %p818, %p622
      %p1170 = pneg %p1169
      // Predicated region
      $region65: #{gcn_forward_prepared.1} parent=43 // pred_check
        _
      $region66: #{gcn_forward_prepared.1} parent=43 // pred_check_branch
        %1172 = sbr.rel (%p1169) target = $region68
      $region67: #{gcn_forward_prepared.1} parent=43 // pred_region
        %v1173 = vld [vmem:[%s365] sm:$0xff]
        %v1174 = vld [vmem:[%s365 + $0x8] sm:$0xff]
        %v1175 = vld [vmem:[%s365 + $0x10] sm:$0xff]
        %v1176 = vld [vmem:[%s365 + $0x18] sm:$0xff]
        %v1177 = vld [vmem:[%s365 + $0x20] sm:$0xff]
        %v1178 = vld [vmem:[%s365 + $0x28] sm:$0xff]
        %v1179 = vld [vmem:[%s365 + $0x30] sm:$0xff]
        %v1180 = vld [vmem:[%s365 + $0x38] sm:$0xff]
        %v1181 = vld [vmem:[%s365 + $0x40] sm:$0xff]
        %v1182 = vld [vmem:[%s365 + $0x48] sm:$0xff]
        %v1183 = vld [vmem:[%s365 + $0x50] sm:$0xff]
        %v1184 = vld [vmem:[%s365 + $0x58] sm:$0xff]
        %v1185 = vld [vmem:[%s365 + $0x60] sm:$0xff]
        %v1186 = vld [vmem:[%s365 + $0x68] sm:$0xff]
        %v1187 = vld [vmem:[%s365 + $0x70] sm:$0xff]
        %v1188 = vld [vmem:[%s365 + $0x78] sm:$0xff]
        %v1189 = vld [vmem:[%s5] sm:$0x1]
        %v1191 = vlaneseq
        %v1192 = vshrl.u32 %v1191, 7
        %v1193 = vsub.s32 0, %v1192
        %v1194 = vrot.slane %v1189, %v1193
        %v1196 = vadd.f32 %v1173, %v1194
        %v1197 = vadd.f32 %v1174, %v1194
        %v1198 = vadd.f32 %v1175, %v1194
        %v1199 = vadd.f32 %v1176, %v1194
        %v1200 = vadd.f32 %v1177, %v1194
        %v1201 = vadd.f32 %v1178, %v1194
        %v1202 = vadd.f32 %v1179, %v1194
        %v1203 = vadd.f32 %v1180, %v1194
        %v1204 = vadd.f32 %v1181, %v1194
        %v1205 = vadd.f32 %v1182, %v1194
        %v1206 = vadd.f32 %v1183, %v1194
        %v1207 = vadd.f32 %v1184, %v1194
        %v1208 = vadd.f32 %v1185, %v1194
        %v1209 = vadd.f32 %v1186, %v1194
        %v1210 = vadd.f32 %v1187, %v1194
        %v1211 = vadd.f32 %v1188, %v1194
        %1212 = vst [vmem:[%s365] sm:$0xff] %v1196
        %1213 = vst [vmem:[%s365 + $0x8] sm:$0xff] %v1197
        %1214 = vst [vmem:[%s365 + $0x10] sm:$0xff] %v1198
        %1215 = vst [vmem:[%s365 + $0x18] sm:$0xff] %v1199
        %1216 = vst [vmem:[%s365 + $0x20] sm:$0xff] %v1200
        %1217 = vst [vmem:[%s365 + $0x28] sm:$0xff] %v1201
        %1218 = vst [vmem:[%s365 + $0x30] sm:$0xff] %v1202
        %1219 = vst [vmem:[%s365 + $0x38] sm:$0xff] %v1203
        %1220 = vst [vmem:[%s365 + $0x40] sm:$0xff] %v1204
        %1221 = vst [vmem:[%s365 + $0x48] sm:$0xff] %v1205
        %1222 = vst [vmem:[%s365 + $0x50] sm:$0xff] %v1206
        %1223 = vst [vmem:[%s365 + $0x58] sm:$0xff] %v1207
        %1224 = vst [vmem:[%s365 + $0x60] sm:$0xff] %v1208
        %1225 = vst [vmem:[%s365 + $0x68] sm:$0xff] %v1209
        %1226 = vst [vmem:[%s365 + $0x70] sm:$0xff] %v1210
        %1227 = vst [vmem:[%s365 + $0x78] sm:$0xff] %v1211
      $region68: #{gcn_forward_prepared.1} parent=43 // pred_fallthru
        _
      %s1228 = smul.u32 %s22, %s23
      %s1229 = smul.u32 16, %s1228
      %p1230 = scmp.lt.s32.totalorder %s1229, 15
      %s1231 = scalar_select %p1230, %s1229, 15
      %s1232 = smul.addr %s1231, 8
      %s1233 = scalar_lea.vmem %s6, %s1232
      // Predicated region
      $region69: #{gcn_forward_prepared.1} parent=43 // pred_check
        %p1234 = pneg %p210
      $region70: #{gcn_forward_prepared.1} parent=43 // pred_check_branch
        %1236 = sbr.rel (%p1234) target = $region72
      $region71: #{gcn_forward_prepared.1} parent=43 // pred_region
        %s1237 = smul.u32 %s22, %s23
        %s1238 = smul.u32 16, %s1237
      $region72: #{gcn_forward_prepared.1} parent=43 // pred_fallthru
        _
    $region44: #{gcn_forward_prepared.1} parent=5 // pred_fallthru
      _
    %p1239 = scmp.le.s32.totalorder 2, %s12
    // Predicated region
    $region73: #{gcn_forward_prepared.1} parent=5 // pred_check
      %p1240 = pneg %p1239
    $region74: #{gcn_forward_prepared.1} parent=5 // pred_check_branch
      %1242 = sbr.rel (%p1240) target = $region76
    $region75: #{gcn_forward_prepared.1} parent=5 // pred_region
      %s1243 = ssub.s32 %s12, 2
      // Predicated region
      $region77: #{gcn_forward_prepared.1} parent=75 // pred_check
        %p1244 = pneg %p216
      $region78: #{gcn_forward_prepared.1} parent=75 // pred_check_branch
        %1246 = sbr.rel (%p1244) target = $region80
      $region79: #{gcn_forward_prepared.1} parent=75 // pred_region
        %s1247 = smul.u32 %s25, %s26
        %s1248 = smul.u32 16, %s1247
        %p1249 = scmp.lt.s32.totalorder %s1248, 15
        %s1250 = scalar_select %p1249, %s1248, 15
        %s1251 = smul.addr %s1250, 8
        %s1252 = scalar_lea.vmem %s6, %s1251
      $region80: #{gcn_forward_prepared.1} parent=75 // pred_fallthru
        _
    $region76: #{gcn_forward_prepared.1} parent=5 // pred_fallthru
      _
  $region6: #{gcn_forward_prepared.1} parent=0 // loop_footer
    %s16 = sadd.s32 1, %s12
  $region7: #{gcn_forward_prepared.1} parent=0 // loop_footer_branch
    %11 = sbr.rel target = $region3
  $region8: #{gcn_forward_prepared.1} parent=0 // loop_exit
    _

</llo_original>
